<compile_context>
chip_gen: v6e
topology: v6e:2x2x1
jax: 0.10.0
libtpu: 0.0.40
codegen_flags: <defaults>
</compile_context>

<pallas_src>
import jax
import jax.numpy as jnp
from jax.experimental import pallas as pl
from jax.experimental.pallas import tpu as pltpu


# ----------------------------------------------------------------------------
# Fused kernel: BiLSTM recurrence + SelfAttention + output Linear.
# ----------------------------------------------------------------------------
def _sentiment_kernel(x_ref, wih_ref, whh_ref, b_ref,
                      w1_ref, b1_ref, w2_ref, wo_ref, bo_ref,
                      logits_ref, weights_ref):
    B, T, E = x_ref.shape
    G = wih_ref.shape[1]          # 8H = four gates x two directions
    H2 = G // 4                   # one gate block, both directions: [fwd H | bwd H]
    H = H2 // 2

    # ---- input projection for all timesteps & both directions (one bf16 MXU matmul) ----
    x_flat = x_ref[...].reshape(B * T, E)                               # bf16
    gx = (jnp.dot(x_flat, wih_ref[...], preferred_element_type=jnp.float32)
          + b_ref[...]).reshape(B, T, G)                                # f32, bias folded in

    # Forward columns of every 2H-wide gate block read x_s, backward columns read
    # x_{T-1-s}.  Hoist the selection out of the recurrence: build the time-reversed
    # copy once (static slices) and do one vectorized select over (B,T,8H).
    gx_rev = jnp.concatenate([gx[:, T - 1 - s:T - s, :] for s in range(T)], axis=1)
    col = jax.lax.broadcasted_iota(jnp.int32, (B, T, G), dimension=2)
    gx_sel = jnp.where((col % H2) < H, gx, gx_rev)                      # (B,T,8H)

    whh = whh_ref[...]            # bf16 (2H,8H), block-diagonal over directions

    # ---- recurrence: fully unrolled, hidden states stay in vregs (no VMEM scratch) ----
    h_cat = jnp.zeros((B, H2), jnp.float32)     # [h_fwd | h_bwd]
    c_cat = jnp.zeros((B, H2), jnp.float32)     # [c_fwd | c_bwd]
    h_fwd, h_bwd = [], []
    for s in range(T):
        gates = gx_sel[:, s, :] + jnp.dot(h_cat.astype(whh.dtype), whh,
                                          preferred_element_type=jnp.float32)
        # PyTorch LSTM gate order: input, forget, cell(g), output (both dirs at once)
        i = jax.nn.sigmoid(gates[:, 0 * H2:1 * H2])
        f = jax.nn.sigmoid(gates[:, 1 * H2:2 * H2])
        g = jnp.tanh(gates[:, 2 * H2:3 * H2])
        o = jax.nn.sigmoid(gates[:, 3 * H2:4 * H2])
        c_cat = f * c_cat + i * g
        h_cat = o * jnp.tanh(c_cat)
        h_fwd.append(h_cat[:, None, :H])        # forward hidden belongs to time s
        h_bwd.append(h_cat[:, None, H:])        # backward hidden belongs to time T-1-s

    # bidirectional output: r_out[:, :, :H] + r_out[:, :, H:]  (assembled from vregs)
    r = (jnp.concatenate(h_fwd, axis=1)
         + jnp.concatenate(h_bwd[::-1], axis=1))                        # (B,T,H) f32

    # ---- SelfAttention (Linear -> tanh -> Linear(.,1) -> softmax over seq) ----------
    rr = r.reshape(B * T, H)
    a1 = jnp.tanh(jnp.dot(rr, w1_ref[...], preferred_element_type=jnp.float32)
                  + b1_ref[...])                                        # (B*T, H//2)
    # Linear(H//2, 1): VPU multiply + lane reduce (no 1-wide MXU matmul).
    # The scalar bias b2 is omitted: softmax is shift-invariant.
    score = jnp.sum(a1 * w2_ref[...], axis=-1, keepdims=True).reshape(B, T)
    score = score - jnp.max(score, axis=1, keepdims=True)
    e = jnp.exp(score)
    w = e / jnp.sum(e, axis=1, keepdims=True)                           # softmax over seq
    weights_ref[...] = w

    # context vector: VPU broadcast-multiply + reduce over T
    ctx = jnp.tanh(jnp.sum(w[:, :, None] * r, axis=1))                  # (B, H)

    # ---- classifier Linear(H, tag) ---------------------------------------------------
    logits_ref[...] = (jnp.dot(ctx, wo_ref[...], preferred_element_type=jnp.float32)
                       + bo_ref[...])


def sentiment_kernel_call(embed, wih, whh, b, w1, b1, w2, wo, bo, *, batch_block=None):
    B, T, E = embed.shape
    H2, G = whh.shape
    H = H2 // 2
    Hh = w1.shape[1]
    tag = wo.shape[1]
    # Batch tiling: at production sizes pick a multiple of 8 so the grid shards
    # across TensorCores (v7x) / pipelines the embed DMA (v5e/v6e).  At toy sizes
    # this degenerates to a single block.
    tb = B if batch_block is None else min(batch_block, B)
    nb = pl.cdiv(B, tb)
    return pl.pallas_call(
        _sentiment_kernel,
        out_shape=(jax.ShapeDtypeStruct((B, tag), jnp.float32),
                   jax.ShapeDtypeStruct((B, T), jnp.float32)),
        grid_spec=pltpu.PrefetchScalarGridSpec(
            num_scalar_prefetch=0,
            grid=(nb,),
            in_specs=[
                pl.BlockSpec((tb, T, E), lambda i: (i, 0, 0)),        # embed (bf16)
                pl.BlockSpec((E, G), lambda i: (0, 0)),               # fused W_ih (E,8H) bf16
                pl.BlockSpec((H2, G), lambda i: (0, 0)),              # fused W_hh (block-diag) bf16
                pl.BlockSpec((1, G), lambda i: (0, 0)),               # fused b_ih + b_hh (f32)
                pl.BlockSpec((H, Hh), lambda i: (0, 0)),              # attention W1^T
                pl.BlockSpec((1, Hh), lambda i: (0, 0)),              # attention b1
                pl.BlockSpec((1, Hh), lambda i: (0, 0)),              # attention W2 (row vector)
                pl.BlockSpec((H, tag), lambda i: (0, 0)),             # classifier W^T
                pl.BlockSpec((1, tag), lambda i: (0, 0)),             # classifier b
            ],
            out_specs=(
                pl.BlockSpec((tb, tag), lambda i: (i, 0)),            # logits
                pl.BlockSpec((tb, T), lambda i: (i, 0)),              # attention weights
            ),
        ),
        compiler_params=pltpu.CompilerParams(
            dimension_semantics=("parallel",)),
    )(embed, wih, whh, b, w1, b1, w2, wo, bo)


# ----------------------------------------------------------------------------
# Parameter fusion: interleave fwd/bwd LSTM weights gate-major / direction-minor.
# ----------------------------------------------------------------------------
def fuse_bilstm_params(wih_f, whh_f, b_f, wih_b, whh_b, b_b):
    """Inputs are transposed PyTorch params: (in_dim, 4H), gate order i,f,g,o.

    Returns (W_ih (E,8H), W_hh (2H,8H) block-diagonal, b (1,8H)); every gate block
    of width 2H is laid out [forward | backward], matching the kernel.
    """
    H = whh_f.shape[0]

    def interleave(a_f, a_b):                      # (n, 4H) x2 -> (n, 8H)
        n = a_f.shape[0]
        return jnp.stack([a_f.reshape(n, 4, H), a_b.reshape(n, 4, H)],
                         axis=2).reshape(n, 8 * H)

    wih = interleave(wih_f, wih_b)
    b = interleave(b_f, b_b)
    whh = jnp.concatenate(
        [interleave(whh_f, jnp.zeros_like(whh_f)),      # fwd rows -> fwd columns only
         interleave(jnp.zeros_like(whh_b), whh_b)],     # bwd rows -> bwd columns only
        axis=0)                                         # (2H, 8H)
    return wih, whh, b


# ----------------------------------------------------------------------------
# Full forward pass (glue in plain JAX: embedding gathers + bf16 cast only).
# ----------------------------------------------------------------------------
def sentiment_forward(params, inputs, wd2vec_inputs, mask):
    # Embedding lookups (corpus table is zero-initialized, as in the module).
    embed = params["corpus_emb"][inputs] + params["wd2vec_emb"][wd2vec_inputs]  # (B,T,E)
    embed = embed.astype(jnp.bfloat16)        # bf16 MXU input, f32 accumulation in-kernel
    # eval mode: dropout_embed / dropout are identity; `mask` unused (see TODO above)
    logits, weights = sentiment_kernel_call(
        embed, params["wih_gd"], params["whh_gd"], params["b_gd"],
        params["att_w1"], params["att_b1"], params["att_w2"],
        params["out_w"], params["out_b"])
    return logits, weights


# ----------------------------------------------------------------------------
# Pure-JAX reference (f32, per-direction LSTM) used only for the correctness check.
# ----------------------------------------------------------------------------
def reference_forward(params, inputs, wd2vec_inputs):
    embed = params["corpus_emb"][inputs] + params["wd2vec_emb"][wd2vec_inputs]

    def run_dir(x_seq, wih, whh, b):
        B, T, _ = x_seq.shape
        H = whh.shape[0]
        h = jnp.zeros((B, H), jnp.float32)
        c = jnp.zeros((B, H), jnp.float32)
        hs = []
        for s in range(T):
            gates = x_seq[:, s] @ wih + h @ whh + b
            i = jax.nn.sigmoid(gates[:, :H])
            f = jax.nn.sigmoid(gates[:, H:2 * H])
            g = jnp.tanh(gates[:, 2 * H:3 * H])
            o = jax.nn.sigmoid(gates[:, 3 * H:])
            c = f * c + i * g
            h = o * jnp.tanh(c)
            hs.append(h)
        return jnp.stack(hs, axis=1)

    hf = run_dir(embed, params["wih_f"], params["whh_f"], params["b_f"])
    hb = run_dir(embed[:, ::-1], params["wih_b"], params["whh_b"], params["b_b"])[:, ::-1]
    r = hf + hb
    a1 = jnp.tanh(r @ params["att_w1"] + params["att_b1"])
    score = jnp.sum(a1 * params["att_w2"], axis=-1) + params["att_b2"]   # b2 kept here
    w = jax.nn.softmax(score, axis=1)
    ctx = jnp.tanh(jnp.sum(w[:, :, None] * r, axis=1))
    logits = ctx @ params["out_w"] + params["out_b"]
    return logits, w


def init_params(key, corpus_vocab, w2v_vocab, E, H, tag_size):
    ks = jax.random.split(key, 16)
    k = 1.0 / jnp.sqrt(H)
    u = lambda kk, shp, s: jax.random.uniform(kk, shp, jnp.float32, -s, s)
    # Per-direction LSTM params (already transposed to (in, 4H); b = b_ih + b_hh).
    wih_f, whh_f, b_f = u(ks[1], (E, 4 * H), k), u(ks[2], (H, 4 * H), k), u(ks[3], (1, 4 * H), k)
    wih_b, whh_b, b_b = u(ks[4], (E, 4 * H), k), u(ks[5], (H, 4 * H), k), u(ks[6], (1, 4 * H), k)
    wih_gd, whh_gd, b_gd = fuse_bilstm_params(wih_f, whh_f, b_f, wih_b, whh_b, b_b)
    Hh = H // 2
    return {
        # corpus embedding initialized to zeros (as in the PyTorch __init__)
        "corpus_emb": jnp.zeros((corpus_vocab, E), jnp.float32),
        "wd2vec_emb": 0.1 * jax.random.normal(ks[0], (w2v_vocab, E), jnp.float32),
        # raw per-direction LSTM params (reference path)
        "wih_f": wih_f, "whh_f": whh_f, "b_f": b_f,
        "wih_b": wih_b, "whh_b": whh_b, "b_b": b_b,
        # fused bidirectional LSTM params (kernel path); weights streamed as bf16
        "wih_gd": wih_gd.astype(jnp.bfloat16),
        "whh_gd": whh_gd.astype(jnp.bfloat16),
        "b_gd": b_gd,
        # SelfAttention: Linear(H, H//2) -> Tanh -> Linear(H//2, 1)
        "att_w1": u(ks[7], (H, Hh), 1.0 / jnp.sqrt(H)),
        "att_b1": u(ks[8], (1, Hh), 1.0 / jnp.sqrt(H)),
        "att_w2": u(ks[9], (1, Hh), 1.0 / jnp.sqrt(Hh)),   # Linear(Hh,1).weight as a row
        "att_b2": u(ks[10], (1,), 1.0 / jnp.sqrt(Hh)),     # only used by the reference
        # classifier Linear(H, tag_size)
        "out_w": u(ks[11], (H, tag_size), 1.0 / jnp.sqrt(H)),
        "out_b": u(ks[12], (1, tag_size), 1.0 / jnp.sqrt(H)),
    }


if __name__ == "__main__":
    key = jax.random.PRNGKey(0)
    B, T, E, H = 2, 8, 32, 32
    corpus_vocab, w2v_vocab, tag_size = 50, 60, 5

    k_param, k_in1, k_in2 = jax.random.split(key, 3)
    params = init_params(k_param, corpus_vocab, w2v_vocab, E, H, tag_size)

    inputs = jax.random.randint(k_in1, (B, T), 0, corpus_vocab, dtype=jnp.int32)
    wd2vec_inputs = jax.random.randint(k_in2, (B, T), 0, w2v_vocab, dtype=jnp.int32)
    mask = jnp.ones((B, T), jnp.float32)

    logits, weights = jax.jit(sentiment_forward)(params, inputs, wd2vec_inputs, mask)
    jax.block_until_ready((logits, weights))

    assert logits.shape == (B, tag_size) and weights.shape == (B, T)
    assert bool(jnp.all(jnp.isfinite(logits))) and bool(jnp.all(jnp.isfinite(weights)))
    # attention weights must sum to 1 over the sequence dim
    assert bool(jnp.allclose(jnp.sum(weights, axis=1), 1.0, atol=1e-5))

    # numeric check against a pure-JAX f32 reference (bf16 MXU inputs -> loose tol)
    ref_logits, ref_weights = reference_forward(params, inputs, wd2vec_inputs)
    assert bool(jnp.allclose(logits, ref_logits, atol=3e-2)), "logits mismatch vs reference"
    assert bool(jnp.allclose(weights, ref_weights, atol=3e-2)), "weights mismatch vs reference"

    print("KERNEL_OK")
</pallas_src>

<mosaic_0001>
module attributes {stable_mosaic.version = 11 : i64} {
  func.func @_sentiment_kernel(%arg0: i32, %arg1: memref<2x8x32xbf16, #tpu.memory_space<vmem>>, %arg2: memref<32x256xbf16, #tpu.memory_space<vmem>>, %arg3: memref<64x256xbf16, #tpu.memory_space<vmem>>, %arg4: memref<1x256xf32, #tpu.memory_space<vmem>>, %arg5: memref<32x16xf32, #tpu.memory_space<vmem>>, %arg6: memref<1x16xf32, #tpu.memory_space<vmem>>, %arg7: memref<1x16xf32, #tpu.memory_space<vmem>>, %arg8: memref<32x5xf32, #tpu.memory_space<vmem>>, %arg9: memref<1x5xf32, #tpu.memory_space<vmem>>, %arg10: memref<2x5xf32, #tpu.memory_space<vmem>>, %arg11: memref<2x8xf32, #tpu.memory_space<vmem>>) attributes {dimension_semantics = [#tpu.dimension_semantics<parallel>], iteration_bounds = array<i64: 1>, scalar_prefetch = 0 : i64, scratch_operands = 0 : i64, tpu.core_type = #tpu.core_type<tc>, window_params = [{transform_indices = @transform_0, window_bounds = array<i64: 2, 8, 32>}, {pipeline_mode = #tpu.pipeline_mode<synchronous>, transform_indices = @transform_1, window_bounds = array<i64: 32, 256>}, {pipeline_mode = #tpu.pipeline_mode<synchronous>, transform_indices = @transform_2, window_bounds = array<i64: 64, 256>}, {pipeline_mode = #tpu.pipeline_mode<synchronous>, transform_indices = @transform_3, window_bounds = array<i64: 1, 256>}, {pipeline_mode = #tpu.pipeline_mode<synchronous>, transform_indices = @transform_4, window_bounds = array<i64: 32, 16>}, {pipeline_mode = #tpu.pipeline_mode<synchronous>, transform_indices = @transform_5, window_bounds = array<i64: 1, 16>}, {pipeline_mode = #tpu.pipeline_mode<synchronous>, transform_indices = @transform_6, window_bounds = array<i64: 1, 16>}, {pipeline_mode = #tpu.pipeline_mode<synchronous>, transform_indices = @transform_7, window_bounds = array<i64: 32, 5>}, {pipeline_mode = #tpu.pipeline_mode<synchronous>, transform_indices = @transform_8, window_bounds = array<i64: 1, 5>}, {transform_indices = @transform_9, window_bounds = array<i64: 2, 5>}, {transform_indices = @transform_10, window_bounds = array<i64: 2, 8>}]} {
    %c0 = arith.constant 0 : index
    %c0_0 = arith.constant 0 : index
    %c0_1 = arith.constant 0 : index
    %0 = vector.load %arg1[%c0, %c0_0, %c0_1] : memref<2x8x32xbf16, #tpu.memory_space<vmem>>, vector<2x8x32xbf16>
    %1 = vector.shape_cast %0 : vector<2x8x32xbf16> to vector<16x32xbf16>
    %c0_2 = arith.constant 0 : index
    %c0_3 = arith.constant 0 : index
    %2 = vector.load %arg2[%c0_2, %c0_3] : memref<32x256xbf16, #tpu.memory_space<vmem>>, vector<32x256xbf16>
    %cst = arith.constant dense<0.000000e+00> : vector<16x256xf32>
    %3 = tpu.matmul %1, %2, %cst {dimension_numbers = #tpu.dot_dimension_numbers<[1], [0], [0], [1], [0, 0, 1, 1], [], []>} : vector<16x32xbf16>, vector<32x256xbf16>, vector<16x256xf32> -> vector<16x256xf32>
    %c0_4 = arith.constant 0 : index
    %c0_5 = arith.constant 0 : index
    %4 = vector.load %arg4[%c0_4, %c0_5] : memref<1x256xf32, #tpu.memory_space<vmem>>, vector<1x256xf32>
    %5 = vector.broadcast %4 : vector<1x256xf32> to vector<16x256xf32>
    %6 = arith.addf %3, %5 : vector<16x256xf32>
    %7 = vector.shape_cast %6 : vector<16x256xf32> to vector<2x8x256xf32>
    %8 = vector.extract_strided_slice %7 {offsets = [0, 7, 0], sizes = [2, 1, 256], strides = [1, 1, 1]} : vector<2x8x256xf32> to vector<2x1x256xf32>
    %9 = vector.extract_strided_slice %7 {offsets = [0, 6, 0], sizes = [2, 1, 256], strides = [1, 1, 1]} : vector<2x8x256xf32> to vector<2x1x256xf32>
    %10 = vector.extract_strided_slice %7 {offsets = [0, 5, 0], sizes = [2, 1, 256], strides = [1, 1, 1]} : vector<2x8x256xf32> to vector<2x1x256xf32>
    %11 = vector.extract_strided_slice %7 {offsets = [0, 4, 0], sizes = [2, 1, 256], strides = [1, 1, 1]} : vector<2x8x256xf32> to vector<2x1x256xf32>
    %12 = vector.extract_strided_slice %7 {offsets = [0, 3, 0], sizes = [2, 1, 256], strides = [1, 1, 1]} : vector<2x8x256xf32> to vector<2x1x256xf32>
    %13 = vector.extract_strided_slice %7 {offsets = [0, 2, 0], sizes = [2, 1, 256], strides = [1, 1, 1]} : vector<2x8x256xf32> to vector<2x1x256xf32>
    %14 = vector.extract_strided_slice %7 {offsets = [0, 1, 0], sizes = [2, 1, 256], strides = [1, 1, 1]} : vector<2x8x256xf32> to vector<2x1x256xf32>
    %15 = vector.extract_strided_slice %7 {offsets = [0, 0, 0], sizes = [2, 1, 256], strides = [1, 1, 1]} : vector<2x8x256xf32> to vector<2x1x256xf32>
    %16 = tpu.concatenate %8, %9, %10, %11, %12, %13, %14, %15 in 1 : vector<2x1x256xf32>, vector<2x1x256xf32>, vector<2x1x256xf32>, vector<2x1x256xf32>, vector<2x1x256xf32>, vector<2x1x256xf32>, vector<2x1x256xf32>, vector<2x1x256xf32> -> vector<2x8x256xf32>
    %17 = tpu.iota {dimensions = array<i32: 2>} : vector<2x8x256xi32>
    %c64_i32 = arith.constant 64 : i32
    %c0_i32 = arith.constant 0 : i32
    %18 = arith.cmpi eq, %c64_i32, %c0_i32 : i32
    %c1_i32 = arith.constant 1 : i32
    %19 = arith.select %18, %c1_i32, %c64_i32 : i32
    %20 = vector.broadcast %19 : i32 to vector<2x8x256xi32>
    %21 = arith.remsi %17, %20 : vector<2x8x256xi32>
    %c0_i32_6 = arith.constant 0 : i32
    %22 = vector.broadcast %c0_i32_6 : i32 to vector<2x8x256xi32>
    %23 = arith.cmpi ne, %21, %22 : vector<2x8x256xi32>
    %c0_i32_7 = arith.constant 0 : i32
    %24 = vector.broadcast %c0_i32_7 : i32 to vector<2x8x256xi32>
    %25 = arith.cmpi slt, %21, %24 : vector<2x8x256xi32>
    %c0_i32_8 = arith.constant 0 : i32
    %26 = arith.cmpi slt, %19, %c0_i32_8 : i32
    %27 = vector.broadcast %26 : i1 to vector<2x8x256xi1>
    %28 = vector.broadcast %27 : vector<2x8x256xi1> to vector<2x8x256xi1>
    %29 = arith.xori %25, %28 : vector<2x8x256xi1>
    %30 = arith.andi %29, %23 : vector<2x8x256xi1>
    %31 = vector.broadcast %19 : i32 to vector<2x8x256xi32>
    %32 = arith.addi %21, %31 : vector<2x8x256xi32>
    %33 = arith.select %30, %32, %21 : vector<2x8x256xi1>, vector<2x8x256xi32>
    %c32_i32 = arith.constant 32 : i32
    %34 = vector.broadcast %c32_i32 : i32 to vector<2x8x256xi32>
    %35 = arith.cmpi slt, %33, %34 : vector<2x8x256xi32>
    %36 = arith.select %35, %7, %16 : vector<2x8x256xi1>, vector<2x8x256xf32>
    %c0_9 = arith.constant 0 : index
    %c0_10 = arith.constant 0 : index
    %37 = vector.load %arg3[%c0_9, %c0_10] : memref<64x256xbf16, #tpu.memory_space<vmem>>, vector<64x256xbf16>
    %cst_11 = arith.constant 0.000000e+00 : f32
    %38 = vector.broadcast %cst_11 : f32 to vector<2x64xf32>
    %cst_12 = arith.constant 0.000000e+00 : f32
    %39 = vector.broadcast %cst_12 : f32 to vector<2x64xf32>
    %40 = vector.extract_strided_slice %36 {offsets = [0, 0, 0], sizes = [2, 1, 256], strides = [1, 1, 1]} : vector<2x8x256xf32> to vector<2x1x256xf32>
    %41 = vector.shape_cast %40 : vector<2x1x256xf32> to vector<2x256xf32>
    %42 = arith.truncf %38 : vector<2x64xf32> to vector<2x64xbf16>
    %cst_13 = arith.constant dense<0.000000e+00> : vector<2x256xf32>
    %43 = tpu.matmul %42, %37, %cst_13 {dimension_numbers = #tpu.dot_dimension_numbers<[1], [0], [0], [1], [0, 0, 1, 1], [], []>} : vector<2x64xbf16>, vector<64x256xbf16>, vector<2x256xf32> -> vector<2x256xf32>
    %44 = arith.addf %41, %43 : vector<2x256xf32>
    %45 = vector.extract_strided_slice %44 {offsets = [0, 0], sizes = [2, 64], strides = [1, 1]} : vector<2x256xf32> to vector<2x64xf32>
    %46 = arith.negf %45 : vector<2x64xf32>
    %47 = math.exp %46 : vector<2x64xf32>
    %cst_14 = arith.constant 1.000000e+00 : f32
    %48 = vector.broadcast %cst_14 : f32 to vector<2x64xf32>
    %49 = arith.addf %48, %47 : vector<2x64xf32>
    %50 = arith.divf %48, %49 : vector<2x64xf32>
    %51 = vector.extract_strided_slice %44 {offsets = [0, 64], sizes = [2, 64], strides = [1, 1]} : vector<2x256xf32> to vector<2x64xf32>
    %52 = arith.negf %51 : vector<2x64xf32>
    %53 = math.exp %52 : vector<2x64xf32>
    %cst_15 = arith.constant 1.000000e+00 : f32
    %54 = vector.broadcast %cst_15 : f32 to vector<2x64xf32>
    %55 = arith.addf %54, %53 : vector<2x64xf32>
    %56 = arith.divf %54, %55 : vector<2x64xf32>
    %57 = vector.extract_strided_slice %44 {offsets = [0, 128], sizes = [2, 64], strides = [1, 1]} : vector<2x256xf32> to vector<2x64xf32>
    %58 = math.tanh %57 : vector<2x64xf32>
    %59 = vector.extract_strided_slice %44 {offsets = [0, 192], sizes = [2, 64], strides = [1, 1]} : vector<2x256xf32> to vector<2x64xf32>
    %60 = arith.negf %59 : vector<2x64xf32>
    %61 = math.exp %60 : vector<2x64xf32>
    %cst_16 = arith.constant 1.000000e+00 : f32
    %62 = vector.broadcast %cst_16 : f32 to vector<2x64xf32>
    %63 = arith.addf %62, %61 : vector<2x64xf32>
    %64 = arith.divf %62, %63 : vector<2x64xf32>
    %65 = arith.mulf %56, %39 : vector<2x64xf32>
    %66 = arith.mulf %50, %58 : vector<2x64xf32>
    %67 = arith.addf %65, %66 : vector<2x64xf32>
    %68 = math.tanh %67 : vector<2x64xf32>
    %69 = arith.mulf %64, %68 : vector<2x64xf32>
    %70 = vector.extract_strided_slice %69 {offsets = [0, 0], sizes = [2, 32], strides = [1, 1]} : vector<2x64xf32> to vector<2x32xf32>
    %71 = vector.shape_cast %70 : vector<2x32xf32> to vector<2x1x32xf32>
    %72 = vector.extract_strided_slice %69 {offsets = [0, 32], sizes = [2, 32], strides = [1, 1]} : vector<2x64xf32> to vector<2x32xf32>
    %73 = vector.shape_cast %72 : vector<2x32xf32> to vector<2x1x32xf32>
    %74 = vector.extract_strided_slice %36 {offsets = [0, 1, 0], sizes = [2, 1, 256], strides = [1, 1, 1]} : vector<2x8x256xf32> to vector<2x1x256xf32>
    %75 = vector.shape_cast %74 : vector<2x1x256xf32> to vector<2x256xf32>
    %76 = arith.truncf %69 : vector<2x64xf32> to vector<2x64xbf16>
    %cst_17 = arith.constant dense<0.000000e+00> : vector<2x256xf32>
    %77 = tpu.matmul %76, %37, %cst_17 {dimension_numbers = #tpu.dot_dimension_numbers<[1], [0], [0], [1], [0, 0, 1, 1], [], []>} : vector<2x64xbf16>, vector<64x256xbf16>, vector<2x256xf32> -> vector<2x256xf32>
    %78 = arith.addf %75, %77 : vector<2x256xf32>
    %79 = vector.extract_strided_slice %78 {offsets = [0, 0], sizes = [2, 64], strides = [1, 1]} : vector<2x256xf32> to vector<2x64xf32>
    %80 = arith.negf %79 : vector<2x64xf32>
    %81 = math.exp %80 : vector<2x64xf32>
    %cst_18 = arith.constant 1.000000e+00 : f32
    %82 = vector.broadcast %cst_18 : f32 to vector<2x64xf32>
    %83 = arith.addf %82, %81 : vector<2x64xf32>
    %84 = arith.divf %82, %83 : vector<2x64xf32>
    %85 = vector.extract_strided_slice %78 {offsets = [0, 64], sizes = [2, 64], strides = [1, 1]} : vector<2x256xf32> to vector<2x64xf32>
    %86 = arith.negf %85 : vector<2x64xf32>
    %87 = math.exp %86 : vector<2x64xf32>
    %cst_19 = arith.constant 1.000000e+00 : f32
    %88 = vector.broadcast %cst_19 : f32 to vector<2x64xf32>
    %89 = arith.addf %88, %87 : vector<2x64xf32>
    %90 = arith.divf %88, %89 : vector<2x64xf32>
    %91 = vector.extract_strided_slice %78 {offsets = [0, 128], sizes = [2, 64], strides = [1, 1]} : vector<2x256xf32> to vector<2x64xf32>
    %92 = math.tanh %91 : vector<2x64xf32>
    %93 = vector.extract_strided_slice %78 {offsets = [0, 192], sizes = [2, 64], strides = [1, 1]} : vector<2x256xf32> to vector<2x64xf32>
    %94 = arith.negf %93 : vector<2x64xf32>
    %95 = math.exp %94 : vector<2x64xf32>
    %cst_20 = arith.constant 1.000000e+00 : f32
    %96 = vector.broadcast %cst_20 : f32 to vector<2x64xf32>
    %97 = arith.addf %96, %95 : vector<2x64xf32>
    %98 = arith.divf %96, %97 : vector<2x64xf32>
    %99 = arith.mulf %90, %67 : vector<2x64xf32>
    %100 = arith.mulf %84, %92 : vector<2x64xf32>
    %101 = arith.addf %99, %100 : vector<2x64xf32>
    %102 = math.tanh %101 : vector<2x64xf32>
    %103 = arith.mulf %98, %102 : vector<2x64xf32>
    %104 = vector.extract_strided_slice %103 {offsets = [0, 0], sizes = [2, 32], strides = [1, 1]} : vector<2x64xf32> to vector<2x32xf32>
    %105 = vector.shape_cast %104 : vector<2x32xf32> to vector<2x1x32xf32>
    %106 = vector.extract_strided_slice %103 {offsets = [0, 32], sizes = [2, 32], strides = [1, 1]} : vector<2x64xf32> to vector<2x32xf32>
    %107 = vector.shape_cast %106 : vector<2x32xf32> to vector<2x1x32xf32>
    %108 = vector.extract_strided_slice %36 {offsets = [0, 2, 0], sizes = [2, 1, 256], strides = [1, 1, 1]} : vector<2x8x256xf32> to vector<2x1x256xf32>
    %109 = vector.shape_cast %108 : vector<2x1x256xf32> to vector<2x256xf32>
    %110 = arith.truncf %103 : vector<2x64xf32> to vector<2x64xbf16>
    %cst_21 = arith.constant dense<0.000000e+00> : vector<2x256xf32>
    %111 = tpu.matmul %110, %37, %cst_21 {dimension_numbers = #tpu.dot_dimension_numbers<[1], [0], [0], [1], [0, 0, 1, 1], [], []>} : vector<2x64xbf16>, vector<64x256xbf16>, vector<2x256xf32> -> vector<2x256xf32>
    %112 = arith.addf %109, %111 : vector<2x256xf32>
    %113 = vector.extract_strided_slice %112 {offsets = [0, 0], sizes = [2, 64], strides = [1, 1]} : vector<2x256xf32> to vector<2x64xf32>
    %114 = arith.negf %113 : vector<2x64xf32>
    %115 = math.exp %114 : vector<2x64xf32>
    %cst_22 = arith.constant 1.000000e+00 : f32
    %116 = vector.broadcast %cst_22 : f32 to vector<2x64xf32>
    %117 = arith.addf %116, %115 : vector<2x64xf32>
    %118 = arith.divf %116, %117 : vector<2x64xf32>
    %119 = vector.extract_strided_slice %112 {offsets = [0, 64], sizes = [2, 64], strides = [1, 1]} : vector<2x256xf32> to vector<2x64xf32>
    %120 = arith.negf %119 : vector<2x64xf32>
    %121 = math.exp %120 : vector<2x64xf32>
    %cst_23 = arith.constant 1.000000e+00 : f32
    %122 = vector.broadcast %cst_23 : f32 to vector<2x64xf32>
    %123 = arith.addf %122, %121 : vector<2x64xf32>
    %124 = arith.divf %122, %123 : vector<2x64xf32>
    %125 = vector.extract_strided_slice %112 {offsets = [0, 128], sizes = [2, 64], strides = [1, 1]} : vector<2x256xf32> to vector<2x64xf32>
    %126 = math.tanh %125 : vector<2x64xf32>
    %127 = vector.extract_strided_slice %112 {offsets = [0, 192], sizes = [2, 64], strides = [1, 1]} : vector<2x256xf32> to vector<2x64xf32>
    %128 = arith.negf %127 : vector<2x64xf32>
    %129 = math.exp %128 : vector<2x64xf32>
    %cst_24 = arith.constant 1.000000e+00 : f32
    %130 = vector.broadcast %cst_24 : f32 to vector<2x64xf32>
    %131 = arith.addf %130, %129 : vector<2x64xf32>
    %132 = arith.divf %130, %131 : vector<2x64xf32>
    %133 = arith.mulf %124, %101 : vector<2x64xf32>
    %134 = arith.mulf %118, %126 : vector<2x64xf32>
    %135 = arith.addf %133, %134 : vector<2x64xf32>
    %136 = math.tanh %135 : vector<2x64xf32>
    %137 = arith.mulf %132, %136 : vector<2x64xf32>
    %138 = vector.extract_strided_slice %137 {offsets = [0, 0], sizes = [2, 32], strides = [1, 1]} : vector<2x64xf32> to vector<2x32xf32>
    %139 = vector.shape_cast %138 : vector<2x32xf32> to vector<2x1x32xf32>
    %140 = vector.extract_strided_slice %137 {offsets = [0, 32], sizes = [2, 32], strides = [1, 1]} : vector<2x64xf32> to vector<2x32xf32>
    %141 = vector.shape_cast %140 : vector<2x32xf32> to vector<2x1x32xf32>
    %142 = vector.extract_strided_slice %36 {offsets = [0, 3, 0], sizes = [2, 1, 256], strides = [1, 1, 1]} : vector<2x8x256xf32> to vector<2x1x256xf32>
    %143 = vector.shape_cast %142 : vector<2x1x256xf32> to vector<2x256xf32>
    %144 = arith.truncf %137 : vector<2x64xf32> to vector<2x64xbf16>
    %cst_25 = arith.constant dense<0.000000e+00> : vector<2x256xf32>
    %145 = tpu.matmul %144, %37, %cst_25 {dimension_numbers = #tpu.dot_dimension_numbers<[1], [0], [0], [1], [0, 0, 1, 1], [], []>} : vector<2x64xbf16>, vector<64x256xbf16>, vector<2x256xf32> -> vector<2x256xf32>
    %146 = arith.addf %143, %145 : vector<2x256xf32>
    %147 = vector.extract_strided_slice %146 {offsets = [0, 0], sizes = [2, 64], strides = [1, 1]} : vector<2x256xf32> to vector<2x64xf32>
    %148 = arith.negf %147 : vector<2x64xf32>
    %149 = math.exp %148 : vector<2x64xf32>
    %cst_26 = arith.constant 1.000000e+00 : f32
    %150 = vector.broadcast %cst_26 : f32 to vector<2x64xf32>
    %151 = arith.addf %150, %149 : vector<2x64xf32>
    %152 = arith.divf %150, %151 : vector<2x64xf32>
    %153 = vector.extract_strided_slice %146 {offsets = [0, 64], sizes = [2, 64], strides = [1, 1]} : vector<2x256xf32> to vector<2x64xf32>
    %154 = arith.negf %153 : vector<2x64xf32>
    %155 = math.exp %154 : vector<2x64xf32>
    %cst_27 = arith.constant 1.000000e+00 : f32
    %156 = vector.broadcast %cst_27 : f32 to vector<2x64xf32>
    %157 = arith.addf %156, %155 : vector<2x64xf32>
    %158 = arith.divf %156, %157 : vector<2x64xf32>
    %159 = vector.extract_strided_slice %146 {offsets = [0, 128], sizes = [2, 64], strides = [1, 1]} : vector<2x256xf32> to vector<2x64xf32>
    %160 = math.tanh %159 : vector<2x64xf32>
    %161 = vector.extract_strided_slice %146 {offsets = [0, 192], sizes = [2, 64], strides = [1, 1]} : vector<2x256xf32> to vector<2x64xf32>
    %162 = arith.negf %161 : vector<2x64xf32>
    %163 = math.exp %162 : vector<2x64xf32>
    %cst_28 = arith.constant 1.000000e+00 : f32
    %164 = vector.broadcast %cst_28 : f32 to vector<2x64xf32>
    %165 = arith.addf %164, %163 : vector<2x64xf32>
    %166 = arith.divf %164, %165 : vector<2x64xf32>
    %167 = arith.mulf %158, %135 : vector<2x64xf32>
    %168 = arith.mulf %152, %160 : vector<2x64xf32>
    %169 = arith.addf %167, %168 : vector<2x64xf32>
    %170 = math.tanh %169 : vector<2x64xf32>
    %171 = arith.mulf %166, %170 : vector<2x64xf32>
    %172 = vector.extract_strided_slice %171 {offsets = [0, 0], sizes = [2, 32], strides = [1, 1]} : vector<2x64xf32> to vector<2x32xf32>
    %173 = vector.shape_cast %172 : vector<2x32xf32> to vector<2x1x32xf32>
    %174 = vector.extract_strided_slice %171 {offsets = [0, 32], sizes = [2, 32], strides = [1, 1]} : vector<2x64xf32> to vector<2x32xf32>
    %175 = vector.shape_cast %174 : vector<2x32xf32> to vector<2x1x32xf32>
    %176 = vector.extract_strided_slice %36 {offsets = [0, 4, 0], sizes = [2, 1, 256], strides = [1, 1, 1]} : vector<2x8x256xf32> to vector<2x1x256xf32>
    %177 = vector.shape_cast %176 : vector<2x1x256xf32> to vector<2x256xf32>
    %178 = arith.truncf %171 : vector<2x64xf32> to vector<2x64xbf16>
    %cst_29 = arith.constant dense<0.000000e+00> : vector<2x256xf32>
    %179 = tpu.matmul %178, %37, %cst_29 {dimension_numbers = #tpu.dot_dimension_numbers<[1], [0], [0], [1], [0, 0, 1, 1], [], []>} : vector<2x64xbf16>, vector<64x256xbf16>, vector<2x256xf32> -> vector<2x256xf32>
    %180 = arith.addf %177, %179 : vector<2x256xf32>
    %181 = vector.extract_strided_slice %180 {offsets = [0, 0], sizes = [2, 64], strides = [1, 1]} : vector<2x256xf32> to vector<2x64xf32>
    %182 = arith.negf %181 : vector<2x64xf32>
    %183 = math.exp %182 : vector<2x64xf32>
    %cst_30 = arith.constant 1.000000e+00 : f32
    %184 = vector.broadcast %cst_30 : f32 to vector<2x64xf32>
    %185 = arith.addf %184, %183 : vector<2x64xf32>
    %186 = arith.divf %184, %185 : vector<2x64xf32>
    %187 = vector.extract_strided_slice %180 {offsets = [0, 64], sizes = [2, 64], strides = [1, 1]} : vector<2x256xf32> to vector<2x64xf32>
    %188 = arith.negf %187 : vector<2x64xf32>
    %189 = math.exp %188 : vector<2x64xf32>
    %cst_31 = arith.constant 1.000000e+00 : f32
    %190 = vector.broadcast %cst_31 : f32 to vector<2x64xf32>
    %191 = arith.addf %190, %189 : vector<2x64xf32>
    %192 = arith.divf %190, %191 : vector<2x64xf32>
    %193 = vector.extract_strided_slice %180 {offsets = [0, 128], sizes = [2, 64], strides = [1, 1]} : vector<2x256xf32> to vector<2x64xf32>
    %194 = math.tanh %193 : vector<2x64xf32>
    %195 = vector.extract_strided_slice %180 {offsets = [0, 192], sizes = [2, 64], strides = [1, 1]} : vector<2x256xf32> to vector<2x64xf32>
    %196 = arith.negf %195 : vector<2x64xf32>
    %197 = math.exp %196 : vector<2x64xf32>
    %cst_32 = arith.constant 1.000000e+00 : f32
    %198 = vector.broadcast %cst_32 : f32 to vector<2x64xf32>
    %199 = arith.addf %198, %197 : vector<2x64xf32>
    %200 = arith.divf %198, %199 : vector<2x64xf32>
    %201 = arith.mulf %192, %169 : vector<2x64xf32>
    %202 = arith.mulf %186, %194 : vector<2x64xf32>
    %203 = arith.addf %201, %202 : vector<2x64xf32>
    %204 = math.tanh %203 : vector<2x64xf32>
    %205 = arith.mulf %200, %204 : vector<2x64xf32>
    %206 = vector.extract_strided_slice %205 {offsets = [0, 0], sizes = [2, 32], strides = [1, 1]} : vector<2x64xf32> to vector<2x32xf32>
    %207 = vector.shape_cast %206 : vector<2x32xf32> to vector<2x1x32xf32>
    %208 = vector.extract_strided_slice %205 {offsets = [0, 32], sizes = [2, 32], strides = [1, 1]} : vector<2x64xf32> to vector<2x32xf32>
    %209 = vector.shape_cast %208 : vector<2x32xf32> to vector<2x1x32xf32>
    %210 = vector.extract_strided_slice %36 {offsets = [0, 5, 0], sizes = [2, 1, 256], strides = [1, 1, 1]} : vector<2x8x256xf32> to vector<2x1x256xf32>
    %211 = vector.shape_cast %210 : vector<2x1x256xf32> to vector<2x256xf32>
    %212 = arith.truncf %205 : vector<2x64xf32> to vector<2x64xbf16>
    %cst_33 = arith.constant dense<0.000000e+00> : vector<2x256xf32>
    %213 = tpu.matmul %212, %37, %cst_33 {dimension_numbers = #tpu.dot_dimension_numbers<[1], [0], [0], [1], [0, 0, 1, 1], [], []>} : vector<2x64xbf16>, vector<64x256xbf16>, vector<2x256xf32> -> vector<2x256xf32>
    %214 = arith.addf %211, %213 : vector<2x256xf32>
    %215 = vector.extract_strided_slice %214 {offsets = [0, 0], sizes = [2, 64], strides = [1, 1]} : vector<2x256xf32> to vector<2x64xf32>
    %216 = arith.negf %215 : vector<2x64xf32>
    %217 = math.exp %216 : vector<2x64xf32>
    %cst_34 = arith.constant 1.000000e+00 : f32
    %218 = vector.broadcast %cst_34 : f32 to vector<2x64xf32>
    %219 = arith.addf %218, %217 : vector<2x64xf32>
    %220 = arith.divf %218, %219 : vector<2x64xf32>
    %221 = vector.extract_strided_slice %214 {offsets = [0, 64], sizes = [2, 64], strides = [1, 1]} : vector<2x256xf32> to vector<2x64xf32>
    %222 = arith.negf %221 : vector<2x64xf32>
    %223 = math.exp %222 : vector<2x64xf32>
    %cst_35 = arith.constant 1.000000e+00 : f32
    %224 = vector.broadcast %cst_35 : f32 to vector<2x64xf32>
    %225 = arith.addf %224, %223 : vector<2x64xf32>
    %226 = arith.divf %224, %225 : vector<2x64xf32>
    %227 = vector.extract_strided_slice %214 {offsets = [0, 128], sizes = [2, 64], strides = [1, 1]} : vector<2x256xf32> to vector<2x64xf32>
    %228 = math.tanh %227 : vector<2x64xf32>
    %229 = vector.extract_strided_slice %214 {offsets = [0, 192], sizes = [2, 64], strides = [1, 1]} : vector<2x256xf32> to vector<2x64xf32>
    %230 = arith.negf %229 : vector<2x64xf32>
    %231 = math.exp %230 : vector<2x64xf32>
    %cst_36 = arith.constant 1.000000e+00 : f32
    %232 = vector.broadcast %cst_36 : f32 to vector<2x64xf32>
    %233 = arith.addf %232, %231 : vector<2x64xf32>
    %234 = arith.divf %232, %233 : vector<2x64xf32>
    %235 = arith.mulf %226, %203 : vector<2x64xf32>
    %236 = arith.mulf %220, %228 : vector<2x64xf32>
    %237 = arith.addf %235, %236 : vector<2x64xf32>
    %238 = math.tanh %237 : vector<2x64xf32>
    %239 = arith.mulf %234, %238 : vector<2x64xf32>
    %240 = vector.extract_strided_slice %239 {offsets = [0, 0], sizes = [2, 32], strides = [1, 1]} : vector<2x64xf32> to vector<2x32xf32>
    %241 = vector.shape_cast %240 : vector<2x32xf32> to vector<2x1x32xf32>
    %242 = vector.extract_strided_slice %239 {offsets = [0, 32], sizes = [2, 32], strides = [1, 1]} : vector<2x64xf32> to vector<2x32xf32>
    %243 = vector.shape_cast %242 : vector<2x32xf32> to vector<2x1x32xf32>
    %244 = vector.extract_strided_slice %36 {offsets = [0, 6, 0], sizes = [2, 1, 256], strides = [1, 1, 1]} : vector<2x8x256xf32> to vector<2x1x256xf32>
    %245 = vector.shape_cast %244 : vector<2x1x256xf32> to vector<2x256xf32>
    %246 = arith.truncf %239 : vector<2x64xf32> to vector<2x64xbf16>
    %cst_37 = arith.constant dense<0.000000e+00> : vector<2x256xf32>
    %247 = tpu.matmul %246, %37, %cst_37 {dimension_numbers = #tpu.dot_dimension_numbers<[1], [0], [0], [1], [0, 0, 1, 1], [], []>} : vector<2x64xbf16>, vector<64x256xbf16>, vector<2x256xf32> -> vector<2x256xf32>
    %248 = arith.addf %245, %247 : vector<2x256xf32>
    %249 = vector.extract_strided_slice %248 {offsets = [0, 0], sizes = [2, 64], strides = [1, 1]} : vector<2x256xf32> to vector<2x64xf32>
    %250 = arith.negf %249 : vector<2x64xf32>
    %251 = math.exp %250 : vector<2x64xf32>
    %cst_38 = arith.constant 1.000000e+00 : f32
    %252 = vector.broadcast %cst_38 : f32 to vector<2x64xf32>
    %253 = arith.addf %252, %251 : vector<2x64xf32>
    %254 = arith.divf %252, %253 : vector<2x64xf32>
    %255 = vector.extract_strided_slice %248 {offsets = [0, 64], sizes = [2, 64], strides = [1, 1]} : vector<2x256xf32> to vector<2x64xf32>
    %256 = arith.negf %255 : vector<2x64xf32>
    %257 = math.exp %256 : vector<2x64xf32>
    %cst_39 = arith.constant 1.000000e+00 : f32
    %258 = vector.broadcast %cst_39 : f32 to vector<2x64xf32>
    %259 = arith.addf %258, %257 : vector<2x64xf32>
    %260 = arith.divf %258, %259 : vector<2x64xf32>
    %261 = vector.extract_strided_slice %248 {offsets = [0, 128], sizes = [2, 64], strides = [1, 1]} : vector<2x256xf32> to vector<2x64xf32>
    %262 = math.tanh %261 : vector<2x64xf32>
    %263 = vector.extract_strided_slice %248 {offsets = [0, 192], sizes = [2, 64], strides = [1, 1]} : vector<2x256xf32> to vector<2x64xf32>
    %264 = arith.negf %263 : vector<2x64xf32>
    %265 = math.exp %264 : vector<2x64xf32>
    %cst_40 = arith.constant 1.000000e+00 : f32
    %266 = vector.broadcast %cst_40 : f32 to vector<2x64xf32>
    %267 = arith.addf %266, %265 : vector<2x64xf32>
    %268 = arith.divf %266, %267 : vector<2x64xf32>
    %269 = arith.mulf %260, %237 : vector<2x64xf32>
    %270 = arith.mulf %254, %262 : vector<2x64xf32>
    %271 = arith.addf %269, %270 : vector<2x64xf32>
    %272 = math.tanh %271 : vector<2x64xf32>
    %273 = arith.mulf %268, %272 : vector<2x64xf32>
    %274 = vector.extract_strided_slice %273 {offsets = [0, 0], sizes = [2, 32], strides = [1, 1]} : vector<2x64xf32> to vector<2x32xf32>
    %275 = vector.shape_cast %274 : vector<2x32xf32> to vector<2x1x32xf32>
    %276 = vector.extract_strided_slice %273 {offsets = [0, 32], sizes = [2, 32], strides = [1, 1]} : vector<2x64xf32> to vector<2x32xf32>
    %277 = vector.shape_cast %276 : vector<2x32xf32> to vector<2x1x32xf32>
    %278 = vector.extract_strided_slice %36 {offsets = [0, 7, 0], sizes = [2, 1, 256], strides = [1, 1, 1]} : vector<2x8x256xf32> to vector<2x1x256xf32>
    %279 = vector.shape_cast %278 : vector<2x1x256xf32> to vector<2x256xf32>
    %280 = arith.truncf %273 : vector<2x64xf32> to vector<2x64xbf16>
    %cst_41 = arith.constant dense<0.000000e+00> : vector<2x256xf32>
    %281 = tpu.matmul %280, %37, %cst_41 {dimension_numbers = #tpu.dot_dimension_numbers<[1], [0], [0], [1], [0, 0, 1, 1], [], []>} : vector<2x64xbf16>, vector<64x256xbf16>, vector<2x256xf32> -> vector<2x256xf32>
    %282 = arith.addf %279, %281 : vector<2x256xf32>
    %283 = vector.extract_strided_slice %282 {offsets = [0, 0], sizes = [2, 64], strides = [1, 1]} : vector<2x256xf32> to vector<2x64xf32>
    %284 = arith.negf %283 : vector<2x64xf32>
    %285 = math.exp %284 : vector<2x64xf32>
    %cst_42 = arith.constant 1.000000e+00 : f32
    %286 = vector.broadcast %cst_42 : f32 to vector<2x64xf32>
    %287 = arith.addf %286, %285 : vector<2x64xf32>
    %288 = arith.divf %286, %287 : vector<2x64xf32>
    %289 = vector.extract_strided_slice %282 {offsets = [0, 64], sizes = [2, 64], strides = [1, 1]} : vector<2x256xf32> to vector<2x64xf32>
    %290 = arith.negf %289 : vector<2x64xf32>
    %291 = math.exp %290 : vector<2x64xf32>
    %cst_43 = arith.constant 1.000000e+00 : f32
    %292 = vector.broadcast %cst_43 : f32 to vector<2x64xf32>
    %293 = arith.addf %292, %291 : vector<2x64xf32>
    %294 = arith.divf %292, %293 : vector<2x64xf32>
    %295 = vector.extract_strided_slice %282 {offsets = [0, 128], sizes = [2, 64], strides = [1, 1]} : vector<2x256xf32> to vector<2x64xf32>
    %296 = math.tanh %295 : vector<2x64xf32>
    %297 = vector.extract_strided_slice %282 {offsets = [0, 192], sizes = [2, 64], strides = [1, 1]} : vector<2x256xf32> to vector<2x64xf32>
    %298 = arith.negf %297 : vector<2x64xf32>
    %299 = math.exp %298 : vector<2x64xf32>
    %cst_44 = arith.constant 1.000000e+00 : f32
    %300 = vector.broadcast %cst_44 : f32 to vector<2x64xf32>
    %301 = arith.addf %300, %299 : vector<2x64xf32>
    %302 = arith.divf %300, %301 : vector<2x64xf32>
    %303 = arith.mulf %294, %271 : vector<2x64xf32>
    %304 = arith.mulf %288, %296 : vector<2x64xf32>
    %305 = arith.addf %303, %304 : vector<2x64xf32>
    %306 = math.tanh %305 : vector<2x64xf32>
    %307 = arith.mulf %302, %306 : vector<2x64xf32>
    %308 = vector.extract_strided_slice %307 {offsets = [0, 0], sizes = [2, 32], strides = [1, 1]} : vector<2x64xf32> to vector<2x32xf32>
    %309 = vector.shape_cast %308 : vector<2x32xf32> to vector<2x1x32xf32>
    %310 = vector.extract_strided_slice %307 {offsets = [0, 32], sizes = [2, 32], strides = [1, 1]} : vector<2x64xf32> to vector<2x32xf32>
    %311 = vector.shape_cast %310 : vector<2x32xf32> to vector<2x1x32xf32>
    %312 = tpu.concatenate %71, %105, %139, %173, %207, %241, %275, %309 in 1 : vector<2x1x32xf32>, vector<2x1x32xf32>, vector<2x1x32xf32>, vector<2x1x32xf32>, vector<2x1x32xf32>, vector<2x1x32xf32>, vector<2x1x32xf32>, vector<2x1x32xf32> -> vector<2x8x32xf32>
    %313 = tpu.concatenate %311, %277, %243, %209, %175, %141, %107, %73 in 1 : vector<2x1x32xf32>, vector<2x1x32xf32>, vector<2x1x32xf32>, vector<2x1x32xf32>, vector<2x1x32xf32>, vector<2x1x32xf32>, vector<2x1x32xf32>, vector<2x1x32xf32> -> vector<2x8x32xf32>
    %314 = arith.addf %312, %313 : vector<2x8x32xf32>
    %315 = vector.shape_cast %314 : vector<2x8x32xf32> to vector<16x32xf32>
    %c0_45 = arith.constant 0 : index
    %c0_46 = arith.constant 0 : index
    %316 = vector.load %arg5[%c0_45, %c0_46] : memref<32x16xf32, #tpu.memory_space<vmem>>, vector<32x16xf32>
    %cst_47 = arith.constant dense<0.000000e+00> : vector<16x16xf32>
    %317 = tpu.matmul %315, %316, %cst_47 {dimension_numbers = #tpu.dot_dimension_numbers<[1], [0], [0], [1], [0, 0, 1, 1], [], []>} : vector<16x32xf32>, vector<32x16xf32>, vector<16x16xf32> -> vector<16x16xf32>
    %c0_48 = arith.constant 0 : index
    %c0_49 = arith.constant 0 : index
    %318 = vector.load %arg6[%c0_48, %c0_49] : memref<1x16xf32, #tpu.memory_space<vmem>>, vector<1x16xf32>
    %319 = vector.broadcast %318 : vector<1x16xf32> to vector<16x16xf32>
    %320 = arith.addf %317, %319 : vector<16x16xf32>
    %321 = math.tanh %320 : vector<16x16xf32>
    %c0_50 = arith.constant 0 : index
    %c0_51 = arith.constant 0 : index
    %322 = vector.load %arg7[%c0_50, %c0_51] : memref<1x16xf32, #tpu.memory_space<vmem>>, vector<1x16xf32>
    %323 = vector.broadcast %322 : vector<1x16xf32> to vector<16x16xf32>
    %324 = arith.mulf %321, %323 : vector<16x16xf32>
    %cst_52 = arith.constant dense<0.000000e+00> : vector<16xf32>
    %325 = vector.multi_reduction <add>, %324, %cst_52 [1] : vector<16x16xf32> to vector<16xf32>
    %326 = vector.shape_cast %325 : vector<16xf32> to vector<16x1xf32>
    %327 = vector.shape_cast %326 : vector<16x1xf32> to vector<2x8xf32>
    %cst_53 = arith.constant dense<0xFF800000> : vector<2xf32>
    %328 = vector.multi_reduction <maximumf>, %327, %cst_53 [1] : vector<2x8xf32> to vector<2xf32>
    %329 = vector.shape_cast %328 : vector<2xf32> to vector<2x1xf32>
    %330 = vector.broadcast %329 : vector<2x1xf32> to vector<2x8xf32>
    %331 = arith.subf %327, %330 : vector<2x8xf32>
    %332 = math.exp %331 : vector<2x8xf32>
    %cst_54 = arith.constant dense<0.000000e+00> : vector<2xf32>
    %333 = vector.multi_reduction <add>, %332, %cst_54 [1] : vector<2x8xf32> to vector<2xf32>
    %334 = vector.shape_cast %333 : vector<2xf32> to vector<2x1xf32>
    %335 = vector.broadcast %334 : vector<2x1xf32> to vector<2x8xf32>
    %336 = arith.divf %332, %335 : vector<2x8xf32>
    %c0_55 = arith.constant 0 : index
    %c0_56 = arith.constant 0 : index
    %337 = vector.load %arg11[%c0_55, %c0_56] : memref<2x8xf32, #tpu.memory_space<vmem>>, vector<2x8xf32>
    tpu.vector_store %arg11[%c0_55, %c0_56], %336 {strides = array<i32>} : memref<2x8xf32, #tpu.memory_space<vmem>>, vector<2x8xf32>,
    %338 = vector.shape_cast %336 : vector<2x8xf32> to vector<2x8x1xf32>
    %339 = vector.broadcast %338 : vector<2x8x1xf32> to vector<2x8x32xf32>
    %340 = arith.mulf %339, %314 : vector<2x8x32xf32>
    %cst_57 = arith.constant dense<0.000000e+00> : vector<2x32xf32>
    %341 = vector.multi_reduction <add>, %340, %cst_57 [1] : vector<2x8x32xf32> to vector<2x32xf32>
    %342 = math.tanh %341 : vector<2x32xf32>
    %c0_58 = arith.constant 0 : index
    %c0_59 = arith.constant 0 : index
    %343 = vector.load %arg8[%c0_58, %c0_59] : memref<32x5xf32, #tpu.memory_space<vmem>>, vector<32x5xf32>
    %cst_60 = arith.constant dense<0.000000e+00> : vector<2x5xf32>
    %344 = tpu.matmul %342, %343, %cst_60 {dimension_numbers = #tpu.dot_dimension_numbers<[1], [0], [0], [1], [0, 0, 1, 1], [], []>} : vector<2x32xf32>, vector<32x5xf32>, vector<2x5xf32> -> vector<2x5xf32>
    %c0_61 = arith.constant 0 : index
    %c0_62 = arith.constant 0 : index
    %345 = vector.load %arg9[%c0_61, %c0_62] : memref<1x5xf32, #tpu.memory_space<vmem>>, vector<1x5xf32>
    %346 = vector.broadcast %345 : vector<1x5xf32> to vector<2x5xf32>
    %347 = arith.addf %344, %346 : vector<2x5xf32>
    %c0_63 = arith.constant 0 : index
    %c0_64 = arith.constant 0 : index
    %348 = vector.load %arg10[%c0_63, %c0_64] : memref<2x5xf32, #tpu.memory_space<vmem>>, vector<2x5xf32>
    tpu.vector_store %arg10[%c0_63, %c0_64], %347 {strides = array<i32>} : memref<2x5xf32, #tpu.memory_space<vmem>>, vector<2x5xf32>,
    return
  }
  func.func @transform_0(%arg0: i32) -> (i32, i32, i32) {
    %c0_i32 = arith.constant 0 : i32
    %c0_i32_0 = arith.constant 0 : i32
    %c0_i32_1 = arith.constant 0 : i32
    return %arg0, %c0_i32, %c0_i32_0 : i32, i32, i32
  }
  func.func @transform_1(%arg0: i32) -> (i32, i32) {
    %c0_i32 = arith.constant 0 : i32
    %c0_i32_0 = arith.constant 0 : i32
    %c0_i32_1 = arith.constant 0 : i32
    return %c0_i32, %c0_i32_0 : i32, i32
  }
  func.func @transform_2(%arg0: i32) -> (i32, i32) {
    %c0_i32 = arith.constant 0 : i32
    %c0_i32_0 = arith.constant 0 : i32
    %c0_i32_1 = arith.constant 0 : i32
    return %c0_i32, %c0_i32_0 : i32, i32
  }
  func.func @transform_3(%arg0: i32) -> (i32, i32) {
    %c0_i32 = arith.constant 0 : i32
    %c0_i32_0 = arith.constant 0 : i32
    %c0_i32_1 = arith.constant 0 : i32
    return %c0_i32, %c0_i32_0 : i32, i32
  }
  func.func @transform_4(%arg0: i32) -> (i32, i32) {
    %c0_i32 = arith.constant 0 : i32
    %c0_i32_0 = arith.constant 0 : i32
    %c0_i32_1 = arith.constant 0 : i32
    return %c0_i32, %c0_i32_0 : i32, i32
  }
  func.func @transform_5(%arg0: i32) -> (i32, i32) {
    %c0_i32 = arith.constant 0 : i32
    %c0_i32_0 = arith.constant 0 : i32
    %c0_i32_1 = arith.constant 0 : i32
    return %c0_i32, %c0_i32_0 : i32, i32
  }
  func.func @transform_6(%arg0: i32) -> (i32, i32) {
    %c0_i32 = arith.constant 0 : i32
    %c0_i32_0 = arith.constant 0 : i32
    %c0_i32_1 = arith.constant 0 : i32
    return %c0_i32, %c0_i32_0 : i32, i32
  }
  func.func @transform_7(%arg0: i32) -> (i32, i32) {
    %c0_i32 = arith.constant 0 : i32
    %c0_i32_0 = arith.constant 0 : i32
    %c0_i32_1 = arith.constant 0 : i32
    return %c0_i32, %c0_i32_0 : i32, i32
  }
  func.func @transform_8(%arg0: i32) -> (i32, i32) {
    %c0_i32 = arith.constant 0 : i32
    %c0_i32_0 = arith.constant 0 : i32
    %c0_i32_1 = arith.constant 0 : i32
    return %c0_i32, %c0_i32_0 : i32, i32
  }
  func.func @transform_9(%arg0: i32) -> (i32, i32) {
    %c0_i32 = arith.constant 0 : i32
    %c0_i32_0 = arith.constant 0 : i32
    return %arg0, %c0_i32 : i32, i32
  }
  func.func @transform_10(%arg0: i32) -> (i32, i32) {
    %c0_i32 = arith.constant 0 : i32
    %c0_i32_0 = arith.constant 0 : i32
    return %arg0, %c0_i32 : i32, i32
  }
}

</mosaic_0001>

<llo_original>
// kernel: sentiment_forward.1
$region0: #{sentiment_forward.1}
  #allocation0 [shape = 'u32[]', space=smem, size = 0x4, offset = 0x4, fixed_abs, tag = 'smem constant byte address 0x4 - core index']
  #allocation1 [shape = 'u32[144,128]{1,0:T(1,128)}', space=vmem, size = 0x12000, scoped, tag = 'internal scratch']
  %s0 = inlined_call_operand.vmem [shape: bf16[2,8,32], index: 0, kind: input, shape index: {}]
  %s1 = inlined_call_operand.vmem [shape: bf16[32,256], index: 1, kind: input, shape index: {}]
  %s2 = inlined_call_operand.vmem [shape: bf16[64,256], index: 2, kind: input, shape index: {}]
  %s3 = inlined_call_operand.vmem [shape: f32[1,256], index: 3, kind: input, shape index: {}]
  %s4 = inlined_call_operand.vmem [shape: f32[32,16], index: 4, kind: input, shape index: {}]
  %s5 = inlined_call_operand.vmem [shape: f32[1,16], index: 5, kind: input, shape index: {}]
  %s6 = inlined_call_operand.vmem [shape: f32[1,16], index: 6, kind: input, shape index: {}]
  %s7 = inlined_call_operand.vmem [shape: f32[32,5], index: 7, kind: input, shape index: {}]
  %s8 = inlined_call_operand.vmem [shape: f32[1,5], index: 8, kind: input, shape index: {}]
  %s9 = inlined_call_operand.hbm [shape: f32[2,5], index: 9, kind: output, shape index: {0}]
  %s10 = inlined_call_operand.hbm [shape: f32[2,8], index: 10, kind: output, shape index: {1}]
  %11 = xla_tuple %s9, %s10
  %s12 = sld [smem:[#allocation0]]
  $region54: #{sentiment_forward.1} parent=0
    _
  %s14 = ssub.s32 1, %s12
  %s15 = scalar_select 0, %s14, %s12
  $region1: #{sentiment_forward.1} parent=0
    #allocation2 [shape = 'u8[1024]{0}', space=vmem, size = 0x400, scoped, tag = 'output window, operand 0, single buffered']
    #allocation3 [shape = 's32[1]{0}', space=sflag, size = 0x4, scoped, tag = 'scoped memory for sentiment_forward.1']
    #allocation4 [shape = 'u8[1024]{0}', space=vmem, size = 0x400, scoped, tag = 'output window, operand 1, single buffered']
    #allocation5 [shape = 's32[1]{0}', space=sflag, size = 0x4, scoped, tag = 'scoped memory for sentiment_forward.1']
    %16 = vsyncpa [#allocation3], 0
    %17 = vsyncpa [#allocation5], 0
    // Predicated region
    $region2: #{sentiment_forward.1} parent=1 // pred_check
      _
    $region3: #{sentiment_forward.1} parent=1 // pred_check_branch
      %19 = sbr.rel (0) target = $region5
    $region4: #{sentiment_forward.1} parent=1 // pred_region
      _
    $region5: #{sentiment_forward.1} parent=1 // pred_fallthru
      _
    // Predicated region
    $region6: #{sentiment_forward.1} parent=1 // pred_check
      _
    $region7: #{sentiment_forward.1} parent=1 // pred_check_branch
      %21 = sbr.rel (0) target = $region9
    $region8: #{sentiment_forward.1} parent=1 // pred_region
      _
    $region9: #{sentiment_forward.1} parent=1 // pred_fallthru
      _
    // Predicated region
    $region10: #{sentiment_forward.1} parent=1 // pred_check
      _
    $region11: #{sentiment_forward.1} parent=1 // pred_check_branch
      %23 = sbr.rel (0) target = $region13
    $region12: #{sentiment_forward.1} parent=1 // pred_region
      _
    $region13: #{sentiment_forward.1} parent=1 // pred_fallthru
      _
    // Predicated region
    $region14: #{sentiment_forward.1} parent=1 // pred_check
      _
    $region15: #{sentiment_forward.1} parent=1 // pred_check_branch
      %25 = sbr.rel (0) target = $region17
    $region16: #{sentiment_forward.1} parent=1 // pred_region
      _
    $region17: #{sentiment_forward.1} parent=1 // pred_fallthru
      _
    // Predicated region
    $region18: #{sentiment_forward.1} parent=1 // pred_check
      _
    $region19: #{sentiment_forward.1} parent=1 // pred_check_branch
      %27 = sbr.rel (0) target = $region21
    $region20: #{sentiment_forward.1} parent=1 // pred_region
      _
    $region21: #{sentiment_forward.1} parent=1 // pred_fallthru
      _
    // Predicated region
    $region22: #{sentiment_forward.1} parent=1 // pred_check
      _
    $region23: #{sentiment_forward.1} parent=1 // pred_check_branch
      %29 = sbr.rel (0) target = $region25
    $region24: #{sentiment_forward.1} parent=1 // pred_region
      _
    $region25: #{sentiment_forward.1} parent=1 // pred_fallthru
      _
    // Predicated region
    $region26: #{sentiment_forward.1} parent=1 // pred_check
      _
    $region27: #{sentiment_forward.1} parent=1 // pred_check_branch
      %31 = sbr.rel (0) target = $region29
    $region28: #{sentiment_forward.1} parent=1 // pred_region
      _
    $region29: #{sentiment_forward.1} parent=1 // pred_fallthru
      _
    // Predicated region
    $region30: #{sentiment_forward.1} parent=1 // pred_check
      _
    $region31: #{sentiment_forward.1} parent=1 // pred_check_branch
      %33 = sbr.rel (0) target = $region33
    $region32: #{sentiment_forward.1} parent=1 // pred_region
      _
    $region33: #{sentiment_forward.1} parent=1 // pred_fallthru
      _
    // Predicated region
    $region34: #{sentiment_forward.1} parent=1 // pred_check
      _
    $region35: #{sentiment_forward.1} parent=1 // pred_check_branch
      %35 = sbr.rel (0) target = $region37
    $region36: #{sentiment_forward.1} parent=1 // pred_region
      _
    $region37: #{sentiment_forward.1} parent=1 // pred_fallthru
      _
    %v37 = vld [vmem:[%s0] sm:$0xf]
    %v38 = vld [vmem:[%s0 + $0x4] sm:$0xf]
    %v39 = vld [vmem:[%s1] sm:$0xff]
    %v40 = vld [vmem:[%s1 + $0x8] sm:$0xff]
    %v41 = vld [vmem:[%s1 + $0x10] sm:$0xff]
    %v42 = vld [vmem:[%s1 + $0x18] sm:$0xff]
    %v43 = vld [vmem:[%s3] sm:$0x3]
    %v45 = vlaneseq
    %v46 = vshrl.u32 %v45, 7
    %v47 = vsub.s32 0, %v46
    %v48 = vrot.slane %v43, %v47
    %v49 = vlaneseq
    %v50 = vshrl.u32 %v49, 7
    %v51 = vsub.s32 1, %v50
    %v52 = vrot.slane %v43, %v51
    %v57 = vunpack.c.l.b16 %v37
    %v58 = vunpack.c.l.b16 %v38
    %v59 = vpack.c.b16 %v58, %v57
    %v64 = vunpack.c.l.b16 %v39
    %v65 = vunpack.c.h.b16 %v39
    %v66 = vunpack.c.l.b16 %v40
    %v67 = vunpack.c.h.b16 %v40
    %v68 = vunpack.c.l.b16 %v41
    %v69 = vunpack.c.h.b16 %v41
    %v70 = vunpack.c.l.b16 %v42
    %v71 = vunpack.c.h.b16 %v42
    %v72 = vpack.c.b16 %v66, %v64
    %v73 = vpack.c.b16 %v67, %v65
    %v74 = vpack.c.b16 %v70, %v68
    %v75 = vpack.c.b16 %v71, %v69
    %vm80 = vcmask 261120
    %v82 = vsel %vm80, %v59, 0
    %84 = vmatprep.subr.bf16.mxu0 0
    %85 = vmatpush1.bf16.msra.mxu0 0
    %86 = vmatprep.subr.bf16.mxu0 0
    %87 = vmatpush1.bf16.msra.mxu0 0
    %88 = vmatprep.subr.bf16.mxu0 0
    %89 = vmatpush1.bf16.msra.mxu0 0
    %90 = vmatprep.subr.bf16.mxu0 0
    %91 = vmatpush1.bf16.msra.mxu0 0
    %92 = vmatprep.subr.bf16.mxu0 0
    %93 = vmatpush1.bf16.msra.mxu0 0
    %94 = vmatprep.subr.bf16.mxu0 0
    %95 = vmatpush1.bf16.msra.mxu0 0
    %96 = vmatprep.subr.bf16.mxu0 %v75
    %97 = vmatpush1.bf16.msra.mxu0 %v74
    %98 = vmatprep.subr.bf16.mxu0 %v73
    %99 = vmatpush1.bf16.msra.mxu0 %v72
    %100 = vmatprep.subr.bf16.mxu0 0
    %101 = vmatpush2.bf16.msra.mxu0 0
    %102 = vmatprep.subr.bf16.mxu0 0
    %103 = vmatpush2.bf16.msra.mxu0 0
    %104 = vmatprep.subr.bf16.mxu0 0
    %105 = vmatpush2.bf16.msra.mxu0 0
    %106 = vmatprep.subr.bf16.mxu0 0
    %107 = vmatpush2.bf16.msra.mxu0 0
    %108 = vmatprep.subr.bf16.mxu0 0
    %109 = vmatpush2.bf16.msra.mxu0 0
    %110 = vmatprep.subr.bf16.mxu0 0
    %111 = vmatpush2.bf16.msra.mxu0 0
    %112 = vmatprep.subr.bf16.mxu0 0
    %113 = vmatpush2.bf16.msra.mxu0 0
    %114 = vmatprep.subr.bf16.mxu0 0
    %115 = vmatpush2.bf16.msra.mxu0 0
    %116 = vmatprep.mubr.bf16.mxu0 0
    %117 = vmatmul.mubr.bf16.gmra.mxu0 %v82
    %v118 = vpop.f32.mrf.mxu0
    %v119 = vadd.f32 %v48, %v118
    %v120 = vpop.f32.mrf.mxu0
    %v121 = vadd.f32 %v52, %v120
    %v122 = vpop.f32.mrf.mxu0
    %v123 = vadd.f32 %v48, %v122
    %v124 = vpop.f32.mrf.mxu0
    %v125 = vadd.f32 %v52, %v124
    %126 = vdwg.mxu0
    %v131 = vrot.slane %v119, 7
    %v132 = vrot.slane %v121, 7
    %v133 = vrot.slane %v123, 7
    %v134 = vrot.slane %v125, 7
    %v139 = vrot.slane %v119, 5
    %v140 = vrot.slane %v121, 5
    %v141 = vrot.slane %v123, 5
    %v142 = vrot.slane %v125, 5
    %v147 = vrot.slane %v119, 3
    %v148 = vrot.slane %v121, 3
    %v149 = vrot.slane %v123, 3
    %v150 = vrot.slane %v125, 3
    %v155 = vrot.slane %v119, 1
    %v156 = vrot.slane %v121, 1
    %v157 = vrot.slane %v123, 1
    %v158 = vrot.slane %v125, 1
    %vm163 = vcmask 1040384
    %v164 = vsel %vm163, %v131, %v139
    %v165 = vsel %vm163, %v132, %v140
    %v166 = vsel %vm163, %v133, %v141
    %v167 = vsel %vm163, %v134, %v142
    %vm168 = vcmask 1041408
    %v169 = vsel %vm168, %v164, %v147
    %v170 = vsel %vm168, %v165, %v148
    %v171 = vsel %vm168, %v166, %v149
    %v172 = vsel %vm168, %v167, %v150
    %vm173 = vcmask 1042432
    %v174 = vsel %vm173, %v169, %v155
    %v175 = vsel %vm173, %v170, %v156
    %v176 = vsel %vm173, %v171, %v157
    %v177 = vsel %vm173, %v172, %v158
    %vm178 = vcmask 1043456
    %v179 = vsel %vm178, %v174, %v131
    %v180 = vsel %vm178, %v175, %v132
    %v181 = vsel %vm178, %v176, %v133
    %v182 = vsel %vm178, %v177, %v134
    %vm183 = vcmask 1044480
    %v184 = vsel %vm183, %v179, %v139
    %v185 = vsel %vm183, %v180, %v140
    %v186 = vsel %vm183, %v181, %v141
    %v187 = vsel %vm183, %v182, %v142
    %vm188 = vcmask 1045504
    %v189 = vsel %vm188, %v184, %v147
    %v190 = vsel %vm188, %v185, %v148
    %v191 = vsel %vm188, %v186, %v149
    %v192 = vsel %vm188, %v187, %v150
    %vm193 = vcmask 1046528
    %v194 = vsel %vm193, %v189, %v155
    %v195 = vsel %vm193, %v190, %v156
    %v196 = vsel %vm193, %v191, %v157
    %v197 = vsel %vm193, %v192, %v158
    %v198 = vlaneseq
    %v199 = vand.u32 %v198, 127
    %v200 = vadd.s32 %v199, 128
    %vm201 = vcmp.lt.s32.totalorder %v199, 0
    %v202 = vsub.s32 0, %v199
    %v203 = vsel %vm201, %v202, %v199
    %v204 = vshrl.u32 %v203, 6
    %v205 = vand.u32 %v203, 63
    %v206 = vsub.s32 0, %v205
    %v207 = vsel %vm201, %v206, %v205
    %vm208 = vcmp.lt.s32.totalorder %v200, 0
    %v209 = vsub.s32 0, %v200
    %v210 = vsel %vm208, %v209, %v200
    %v211 = vshrl.u32 %v210, 6
    %v212 = vand.u32 %v210, 63
    %v213 = vsub.s32 0, %v212
    %v214 = vsel %vm208, %v213, %v212
    %vm215 = vcmp.ne.s32.totalorder %v207, 0
    %vm216 = vcmp.ne.s32.totalorder %v214, 0
    %vm217 = vcmp.lt.s32.totalorder %v207, 0
    %vm218 = vcmp.lt.s32.totalorder %v214, 0
    %vm219 = vmand %vm217, %vm215
    %vm220 = vmand %vm218, %vm216
    %v221 = vadd.s32 %v207, 64
    %v222 = vadd.s32 %v214, 64
    %v223 = vsel %vm219, %v221, %v207
    %v224 = vsel %vm220, %v222, %v214
    %vm225 = vcmp.lt.s32.totalorder %v223, 32
    %vm226 = vcmp.lt.s32.totalorder %v224, 32
    %v227 = vsel %vm225, %v119, %v194
    %v228 = vsel %vm226, %v121, %v195
    %v229 = vsel %vm225, %v123, %v196
    %v230 = vsel %vm226, %v125, %v197
    %v231 = vld [vmem:[%s2] sm:$0xff]
    %v232 = vld [vmem:[%s2 + $0x8] sm:$0xff]
    %v233 = vld [vmem:[%s2 + $0x10] sm:$0xff]
    %v234 = vld [vmem:[%s2 + $0x18] sm:$0xff]
    %v235 = vld [vmem:[%s2 + $0x20] sm:$0xff]
    %v236 = vld [vmem:[%s2 + $0x28] sm:$0xff]
    %v237 = vld [vmem:[%s2 + $0x30] sm:$0xff]
    %v238 = vld [vmem:[%s2 + $0x38] sm:$0xff]
    %v247 = vunpack.c.l.b16 %v231
    %v248 = vunpack.c.h.b16 %v231
    %v249 = vunpack.c.l.b16 %v232
    %v250 = vunpack.c.h.b16 %v232
    %v251 = vunpack.c.l.b16 %v233
    %v252 = vunpack.c.h.b16 %v233
    %v253 = vunpack.c.l.b16 %v234
    %v254 = vunpack.c.h.b16 %v234
    %v255 = vunpack.c.l.b16 %v235
    %v256 = vunpack.c.h.b16 %v235
    %v257 = vunpack.c.l.b16 %v236
    %v258 = vunpack.c.h.b16 %v236
    %v259 = vunpack.c.l.b16 %v237
    %v260 = vunpack.c.h.b16 %v237
    %v261 = vunpack.c.l.b16 %v238
    %v262 = vunpack.c.h.b16 %v238
    %v263 = vpack.c.b16 %v249, %v247
    %v264 = vpack.c.b16 %v250, %v248
    %v265 = vpack.c.b16 %v253, %v251
    %v266 = vpack.c.b16 %v254, %v252
    %v267 = vpack.c.b16 %v257, %v255
    %v268 = vpack.c.b16 %v258, %v256
    %v269 = vpack.c.b16 %v261, %v259
    %v270 = vpack.c.b16 %v262, %v260
    %vm279 = vcmask 523264
    %v281 = vsel %vm279, 0, 0
    %283 = vmatprep.subr.bf16.mxu0 0
    %284 = vmatpush1.bf16.msra.mxu0 0
    %285 = vmatprep.subr.bf16.mxu0 0
    %286 = vmatpush1.bf16.msra.mxu0 0
    %287 = vmatprep.subr.bf16.mxu0 0
    %288 = vmatpush1.bf16.msra.mxu0 0
    %289 = vmatprep.subr.bf16.mxu0 0
    %290 = vmatpush1.bf16.msra.mxu0 0
    %291 = vmatprep.subr.bf16.mxu0 %v270
    %292 = vmatpush1.bf16.msra.mxu0 %v269
    %293 = vmatprep.subr.bf16.mxu0 %v268
    %294 = vmatpush1.bf16.msra.mxu0 %v267
    %295 = vmatprep.subr.bf16.mxu0 %v266
    %296 = vmatpush1.bf16.msra.mxu0 %v265
    %297 = vmatprep.subr.bf16.mxu0 %v264
    %298 = vmatpush1.bf16.msra.mxu0 %v263
    %299 = vmatprep.subr.bf16.mxu0 0
    %300 = vmatpush2.bf16.msra.mxu0 0
    %301 = vmatprep.subr.bf16.mxu0 0
    %302 = vmatpush2.bf16.msra.mxu0 0
    %303 = vmatprep.subr.bf16.mxu0 0
    %304 = vmatpush2.bf16.msra.mxu0 0
    %305 = vmatprep.subr.bf16.mxu0 0
    %306 = vmatpush2.bf16.msra.mxu0 0
    %307 = vmatprep.subr.bf16.mxu0 0
    %308 = vmatpush2.bf16.msra.mxu0 0
    %309 = vmatprep.subr.bf16.mxu0 0
    %310 = vmatpush2.bf16.msra.mxu0 0
    %311 = vmatprep.subr.bf16.mxu0 0
    %312 = vmatpush2.bf16.msra.mxu0 0
    %313 = vmatprep.subr.bf16.mxu0 0
    %314 = vmatpush2.bf16.msra.mxu0 0
    %315 = vmatprep.mubr.bf16.mxu0 0
    %316 = vmatmul.mubr.bf16.gmra.mxu0 %v281
    %v317 = vpop.f32.mrf.mxu0
    %v318 = vadd.f32 0.0, %v317
    %v319 = vpop.f32.mrf.mxu0
    %v320 = vadd.f32 0.0, %v319
    %v321 = vpop.f32.mrf.mxu0
    %v322 = vpop.f32.mrf.mxu0
    %323 = vdwg.mxu0
    %v326 = vrot.slane %v318, 1
    %v327 = vrot.slane %v320, 1
    %v332 = vadd.f32 %v227, %v318
    %v333 = vadd.f32 %v228, %v320
    %v334 = vadd.f32 %v229, %v326
    %v335 = vadd.f32 %v230, %v327
    %v336 = vxor.u32 %v332, 2147483648
    %v337 = vxor.u32 %v334, 2147483648
    %v338 = vmul.f32 %v336, 1.442695
    %v339 = vpow.pop %v338
    %v340 = vmul.f32 %v337, 1.442695
    %v341 = vpow.pop %v340
    %v342 = vadd.f32 %v339, 1.0
    %v343 = vadd.f32 %v341, 1.0
    %v344 = vrcp.pop %v342
    %v345 = vmul.f32 1.0, %v344
    %v346 = vrcp.pop %v343
    %v347 = vmul.f32 1.0, %v346
    %v348 = vtanh.pop %v333
    %v349 = vtanh.pop %v335
    %v350 = vxor.u32 %v333, 2147483648
    %v351 = vxor.u32 %v335, 2147483648
    %v352 = vmul.f32 %v350, 1.442695
    %v353 = vpow.pop %v352
    %v354 = vmul.f32 %v351, 1.442695
    %v355 = vpow.pop %v354
    %v356 = vadd.f32 %v353, 1.0
    %v357 = vadd.f32 %v355, 1.0
    %v358 = vrcp.pop %v356
    %v359 = vmul.f32 1.0, %v358
    %v360 = vrcp.pop %v357
    %v361 = vmul.f32 1.0, %v360
    %v362 = vmul.f32 %v345, 0.0
    %v363 = vmul.f32 %v347, 0.0
    %v364 = vmul.f32 %v345, %v348
    %v365 = vmul.f32 %v347, %v349
    %368 = vrot.lane.b32.xlu0 %v364, 64
    %v369 = vpop.permute.xlu0 %368
    %370 = vrot.lane.b32.xlu0 %v365, 64
    %v371 = vpop.permute.xlu0 %370
    %v374 = vadd.f32 %v362, %v369
    %v375 = vadd.f32 %v363, %v371
    %v376 = vtanh.pop %v374
    %v377 = vtanh.pop %v375
    %v378 = vmul.f32 %v359, %v376
    %v379 = vmul.f32 %v361, %v377
    %v380 = vpack.c.bf16 %v378, %v378
    %v381 = vpack.c.bf16 %v379, %v379
    %v384 = vunpack.c.l.b16 %v380
    %v385 = vunpack.c.l.b16 %v381
    %v386 = vrot.slane %v385, 7
    %vm387 = vcmask 1041409
    %v388 = vsel %vm387, %v386, %v384
    %v389 = vpack.c.b16 %v388, %v388
    %390 = vrot.lane.b32.xlu0 %v389, 64
    %v391 = vpop.permute.xlu0 %390
    %v393 = vsel %vm279, %v391, 0
    %395 = vmatprep.subr.bf16.mxu0 0
    %396 = vmatpush1.bf16.msra.mxu0 0
    %397 = vmatprep.subr.bf16.mxu0 0
    %398 = vmatpush1.bf16.msra.mxu0 0
    %399 = vmatprep.subr.bf16.mxu0 0
    %400 = vmatpush1.bf16.msra.mxu0 0
    %401 = vmatprep.subr.bf16.mxu0 0
    %402 = vmatpush1.bf16.msra.mxu0 0
    %403 = vmatprep.subr.bf16.mxu0 %v270
    %404 = vmatpush1.bf16.msra.mxu0 %v269
    %405 = vmatprep.subr.bf16.mxu0 %v268
    %406 = vmatpush1.bf16.msra.mxu0 %v267
    %407 = vmatprep.subr.bf16.mxu0 %v266
    %408 = vmatpush1.bf16.msra.mxu0 %v265
    %409 = vmatprep.subr.bf16.mxu0 %v264
    %410 = vmatpush1.bf16.msra.mxu0 %v263
    %411 = vmatprep.subr.bf16.mxu0 0
    %412 = vmatpush2.bf16.msra.mxu0 0
    %413 = vmatprep.subr.bf16.mxu0 0
    %414 = vmatpush2.bf16.msra.mxu0 0
    %415 = vmatprep.subr.bf16.mxu0 0
    %416 = vmatpush2.bf16.msra.mxu0 0
    %417 = vmatprep.subr.bf16.mxu0 0
    %418 = vmatpush2.bf16.msra.mxu0 0
    %419 = vmatprep.subr.bf16.mxu0 0
    %420 = vmatpush2.bf16.msra.mxu0 0
    %421 = vmatprep.subr.bf16.mxu0 0
    %422 = vmatpush2.bf16.msra.mxu0 0
    %423 = vmatprep.subr.bf16.mxu0 0
    %424 = vmatpush2.bf16.msra.mxu0 0
    %425 = vmatprep.subr.bf16.mxu0 0
    %426 = vmatpush2.bf16.msra.mxu0 0
    %427 = vmatprep.mubr.bf16.mxu0 0
    %428 = vmatmul.mubr.bf16.gmra.mxu0 %v393
    %v429 = vpop.f32.mrf.mxu0
    %v430 = vadd.f32 0.0, %v429
    %v431 = vpop.f32.mrf.mxu0
    %v432 = vadd.f32 0.0, %v431
    %v433 = vpop.f32.mrf.mxu0
    %v434 = vpop.f32.mrf.mxu0
    %435 = vdwg.mxu0
    %v438 = vrot.slane %v430, 7
    %v439 = vrot.slane %v432, 7
    %v444 = vadd.f32 %v227, %v438
    %v445 = vadd.f32 %v228, %v439
    %v446 = vadd.f32 %v229, %v430
    %v447 = vadd.f32 %v230, %v432
    %v448 = vxor.u32 %v444, 2147483648
    %v449 = vxor.u32 %v446, 2147483648
    %v450 = vmul.f32 %v448, 1.442695
    %v451 = vpow.pop %v450
    %v452 = vmul.f32 %v449, 1.442695
    %v453 = vpow.pop %v452
    %v454 = vadd.f32 %v451, 1.0
    %v455 = vadd.f32 %v453, 1.0
    %v456 = vrcp.pop %v454
    %v457 = vmul.f32 1.0, %v456
    %v458 = vrcp.pop %v455
    %v459 = vmul.f32 1.0, %v458
    %v460 = vtanh.pop %v445
    %v461 = vtanh.pop %v447
    %v462 = vxor.u32 %v445, 2147483648
    %v463 = vxor.u32 %v447, 2147483648
    %v464 = vmul.f32 %v462, 1.442695
    %v465 = vpow.pop %v464
    %v466 = vmul.f32 %v463, 1.442695
    %v467 = vpow.pop %v466
    %v468 = vadd.f32 %v465, 1.0
    %v469 = vadd.f32 %v467, 1.0
    %v470 = vrcp.pop %v468
    %v471 = vmul.f32 1.0, %v470
    %v472 = vrcp.pop %v469
    %v473 = vmul.f32 1.0, %v472
    %v476 = vrot.slane %v374, 7
    %v477 = vrot.slane %v375, 7
    %v480 = vmul.f32 %v457, %v476
    %v481 = vmul.f32 %v459, %v477
    %v482 = vmul.f32 %v457, %v460
    %v483 = vmul.f32 %v459, %v461
    %486 = vrot.lane.b32.xlu0 %v482, 64
    %v487 = vpop.permute.xlu0 %486
    %488 = vrot.lane.b32.xlu0 %v483, 64
    %v489 = vpop.permute.xlu0 %488
    %v492 = vadd.f32 %v480, %v487
    %v493 = vadd.f32 %v481, %v489
    %v494 = vtanh.pop %v492
    %v495 = vtanh.pop %v493
    %v496 = vmul.f32 %v471, %v494
    %v497 = vmul.f32 %v473, %v495
    %v498 = vpack.c.bf16 %v496, %v496
    %v499 = vpack.c.bf16 %v497, %v497
    %v502 = vunpack.c.l.b16 %v498
    %v503 = vunpack.c.l.b16 %v499
    %v504 = vrot.slane %v502, 1
    %v505 = vsel %vm387, %v503, %v504
    %v506 = vpack.c.b16 %v505, %v505
    %507 = vrot.lane.b32.xlu0 %v506, 64
    %v508 = vpop.permute.xlu0 %507
    %v510 = vsel %vm279, %v508, 0
    %512 = vmatprep.subr.bf16.mxu0 0
    %513 = vmatpush1.bf16.msra.mxu0 0
    %514 = vmatprep.subr.bf16.mxu0 0
    %515 = vmatpush1.bf16.msra.mxu0 0
    %516 = vmatprep.subr.bf16.mxu0 0
    %517 = vmatpush1.bf16.msra.mxu0 0
    %518 = vmatprep.subr.bf16.mxu0 0
    %519 = vmatpush1.bf16.msra.mxu0 0
    %520 = vmatprep.subr.bf16.mxu0 %v270
    %521 = vmatpush1.bf16.msra.mxu0 %v269
    %522 = vmatprep.subr.bf16.mxu0 %v268
    %523 = vmatpush1.bf16.msra.mxu0 %v267
    %524 = vmatprep.subr.bf16.mxu0 %v266
    %525 = vmatpush1.bf16.msra.mxu0 %v265
    %526 = vmatprep.subr.bf16.mxu0 %v264
    %527 = vmatpush1.bf16.msra.mxu0 %v263
    %528 = vmatprep.subr.bf16.mxu0 0
    %529 = vmatpush2.bf16.msra.mxu0 0
    %530 = vmatprep.subr.bf16.mxu0 0
    %531 = vmatpush2.bf16.msra.mxu0 0
    %532 = vmatprep.subr.bf16.mxu0 0
    %533 = vmatpush2.bf16.msra.mxu0 0
    %534 = vmatprep.subr.bf16.mxu0 0
    %535 = vmatpush2.bf16.msra.mxu0 0
    %536 = vmatprep.subr.bf16.mxu0 0
    %537 = vmatpush2.bf16.msra.mxu0 0
    %538 = vmatprep.subr.bf16.mxu0 0
    %539 = vmatpush2.bf16.msra.mxu0 0
    %540 = vmatprep.subr.bf16.mxu0 0
    %541 = vmatpush2.bf16.msra.mxu0 0
    %542 = vmatprep.subr.bf16.mxu0 0
    %543 = vmatpush2.bf16.msra.mxu0 0
    %544 = vmatprep.mubr.bf16.mxu0 0
    %545 = vmatmul.mubr.bf16.gmra.mxu0 %v510
    %v546 = vpop.f32.mrf.mxu0
    %v547 = vadd.f32 0.0, %v546
    %v548 = vpop.f32.mrf.mxu0
    %v549 = vadd.f32 0.0, %v548
    %v550 = vpop.f32.mrf.mxu0
    %v551 = vpop.f32.mrf.mxu0
    %552 = vdwg.mxu0
    %v555 = vrot.slane %v547, 6
    %v556 = vrot.slane %v549, 6
    %v557 = vrot.slane %v547, 7
    %v558 = vrot.slane %v549, 7
    %v563 = vadd.f32 %v227, %v555
    %v564 = vadd.f32 %v228, %v556
    %v565 = vadd.f32 %v229, %v557
    %v566 = vadd.f32 %v230, %v558
    %v567 = vxor.u32 %v563, 2147483648
    %v568 = vxor.u32 %v565, 2147483648
    %v569 = vmul.f32 %v567, 1.442695
    %v570 = vpow.pop %v569
    %v571 = vmul.f32 %v568, 1.442695
    %v572 = vpow.pop %v571
    %v573 = vadd.f32 %v570, 1.0
    %v574 = vadd.f32 %v572, 1.0
    %v575 = vrcp.pop %v573
    %v576 = vmul.f32 1.0, %v575
    %v577 = vrcp.pop %v574
    %v578 = vmul.f32 1.0, %v577
    %v579 = vtanh.pop %v564
    %v580 = vtanh.pop %v566
    %v581 = vxor.u32 %v564, 2147483648
    %v582 = vxor.u32 %v566, 2147483648
    %v583 = vmul.f32 %v581, 1.442695
    %v584 = vpow.pop %v583
    %v585 = vmul.f32 %v582, 1.442695
    %v586 = vpow.pop %v585
    %v587 = vadd.f32 %v584, 1.0
    %v588 = vadd.f32 %v586, 1.0
    %v589 = vrcp.pop %v587
    %v590 = vmul.f32 1.0, %v589
    %v591 = vrcp.pop %v588
    %v592 = vmul.f32 1.0, %v591
    %v595 = vrot.slane %v492, 7
    %v596 = vrot.slane %v493, 7
    %v599 = vmul.f32 %v576, %v595
    %v600 = vmul.f32 %v578, %v596
    %v601 = vmul.f32 %v576, %v579
    %v602 = vmul.f32 %v578, %v580
    %605 = vrot.lane.b32.xlu0 %v601, 64
    %v606 = vpop.permute.xlu0 %605
    %607 = vrot.lane.b32.xlu0 %v602, 64
    %v608 = vpop.permute.xlu0 %607
    %v611 = vadd.f32 %v599, %v606
    %v612 = vadd.f32 %v600, %v608
    %v613 = vtanh.pop %v611
    %v614 = vtanh.pop %v612
    %v615 = vmul.f32 %v590, %v613
    %v616 = vmul.f32 %v592, %v614
    %v617 = vpack.c.bf16 %v615, %v615
    %v618 = vpack.c.bf16 %v616, %v616
    %v621 = vunpack.c.l.b16 %v617
    %v622 = vunpack.c.l.b16 %v618
    %v623 = vrot.slane %v621, 2
    %v624 = vrot.slane %v622, 1
    %v625 = vsel %vm387, %v624, %v623
    %v626 = vpack.c.b16 %v625, %v625
    %627 = vrot.lane.b32.xlu0 %v626, 64
    %v628 = vpop.permute.xlu0 %627
    %v630 = vsel %vm279, %v628, 0
    %632 = vmatprep.subr.bf16.mxu0 0
    %633 = vmatpush1.bf16.msra.mxu0 0
    %634 = vmatprep.subr.bf16.mxu0 0
    %635 = vmatpush1.bf16.msra.mxu0 0
    %636 = vmatprep.subr.bf16.mxu0 0
    %637 = vmatpush1.bf16.msra.mxu0 0
    %638 = vmatprep.subr.bf16.mxu0 0
    %639 = vmatpush1.bf16.msra.mxu0 0
    %640 = vmatprep.subr.bf16.mxu0 %v270
    %641 = vmatpush1.bf16.msra.mxu0 %v269
    %642 = vmatprep.subr.bf16.mxu0 %v268
    %643 = vmatpush1.bf16.msra.mxu0 %v267
    %644 = vmatprep.subr.bf16.mxu0 %v266
    %645 = vmatpush1.bf16.msra.mxu0 %v265
    %646 = vmatprep.subr.bf16.mxu0 %v264
    %647 = vmatpush1.bf16.msra.mxu0 %v263
    %648 = vmatprep.subr.bf16.mxu0 0
    %649 = vmatpush2.bf16.msra.mxu0 0
    %650 = vmatprep.subr.bf16.mxu0 0
    %651 = vmatpush2.bf16.msra.mxu0 0
    %652 = vmatprep.subr.bf16.mxu0 0
    %653 = vmatpush2.bf16.msra.mxu0 0
    %654 = vmatprep.subr.bf16.mxu0 0
    %655 = vmatpush2.bf16.msra.mxu0 0
    %656 = vmatprep.subr.bf16.mxu0 0
    %657 = vmatpush2.bf16.msra.mxu0 0
    %658 = vmatprep.subr.bf16.mxu0 0
    %659 = vmatpush2.bf16.msra.mxu0 0
    %660 = vmatprep.subr.bf16.mxu0 0
    %661 = vmatpush2.bf16.msra.mxu0 0
    %662 = vmatprep.subr.bf16.mxu0 0
    %663 = vmatpush2.bf16.msra.mxu0 0
    %664 = vmatprep.mubr.bf16.mxu0 0
    %665 = vmatmul.mubr.bf16.gmra.mxu0 %v630
    %v666 = vpop.f32.mrf.mxu0
    %v667 = vadd.f32 0.0, %v666
    %v668 = vpop.f32.mrf.mxu0
    %v669 = vadd.f32 0.0, %v668
    %v670 = vpop.f32.mrf.mxu0
    %v671 = vpop.f32.mrf.mxu0
    %672 = vdwg.mxu0
    %v675 = vrot.slane %v667, 5
    %v676 = vrot.slane %v669, 5
    %v677 = vrot.slane %v667, 6
    %v678 = vrot.slane %v669, 6
    %v683 = vadd.f32 %v227, %v675
    %v684 = vadd.f32 %v228, %v676
    %v685 = vadd.f32 %v229, %v677
    %v686 = vadd.f32 %v230, %v678
    %v687 = vxor.u32 %v683, 2147483648
    %v688 = vxor.u32 %v685, 2147483648
    %v689 = vmul.f32 %v687, 1.442695
    %v690 = vpow.pop %v689
    %v691 = vmul.f32 %v688, 1.442695
    %v692 = vpow.pop %v691
    %v693 = vadd.f32 %v690, 1.0
    %v694 = vadd.f32 %v692, 1.0
    %v695 = vrcp.pop %v693
    %v696 = vmul.f32 1.0, %v695
    %v697 = vrcp.pop %v694
    %v698 = vmul.f32 1.0, %v697
    %v699 = vtanh.pop %v684
    %v700 = vtanh.pop %v686
    %v701 = vxor.u32 %v684, 2147483648
    %v702 = vxor.u32 %v686, 2147483648
    %v703 = vmul.f32 %v701, 1.442695
    %v704 = vpow.pop %v703
    %v705 = vmul.f32 %v702, 1.442695
    %v706 = vpow.pop %v705
    %v707 = vadd.f32 %v704, 1.0
    %v708 = vadd.f32 %v706, 1.0
    %v709 = vrcp.pop %v707
    %v710 = vmul.f32 1.0, %v709
    %v711 = vrcp.pop %v708
    %v712 = vmul.f32 1.0, %v711
    %v715 = vrot.slane %v611, 7
    %v716 = vrot.slane %v612, 7
    %v719 = vmul.f32 %v696, %v715
    %v720 = vmul.f32 %v698, %v716
    %v721 = vmul.f32 %v696, %v699
    %v722 = vmul.f32 %v698, %v700
    %725 = vrot.lane.b32.xlu0 %v721, 64
    %v726 = vpop.permute.xlu0 %725
    %727 = vrot.lane.b32.xlu0 %v722, 64
    %v728 = vpop.permute.xlu0 %727
    %v731 = vadd.f32 %v719, %v726
    %v732 = vadd.f32 %v720, %v728
    %v733 = vtanh.pop %v731
    %v734 = vtanh.pop %v732
    %v735 = vmul.f32 %v710, %v733
    %v736 = vmul.f32 %v712, %v734
    %v737 = vpack.c.bf16 %v735, %v735
    %v738 = vpack.c.bf16 %v736, %v736
    %v741 = vunpack.c.l.b16 %v737
    %v742 = vunpack.c.l.b16 %v738
    %v743 = vrot.slane %v741, 3
    %v744 = vrot.slane %v742, 2
    %v745 = vsel %vm387, %v744, %v743
    %v746 = vpack.c.b16 %v745, %v745
    %747 = vrot.lane.b32.xlu0 %v746, 64
    %v748 = vpop.permute.xlu0 %747
    %v750 = vsel %vm279, %v748, 0
    %752 = vmatprep.subr.bf16.mxu0 0
    %753 = vmatpush1.bf16.msra.mxu0 0
    %754 = vmatprep.subr.bf16.mxu0 0
    %755 = vmatpush1.bf16.msra.mxu0 0
    %756 = vmatprep.subr.bf16.mxu0 0
    %757 = vmatpush1.bf16.msra.mxu0 0
    %758 = vmatprep.subr.bf16.mxu0 0
    %759 = vmatpush1.bf16.msra.mxu0 0
    %760 = vmatprep.subr.bf16.mxu0 %v270
    %761 = vmatpush1.bf16.msra.mxu0 %v269
    %762 = vmatprep.subr.bf16.mxu0 %v268
    %763 = vmatpush1.bf16.msra.mxu0 %v267
    %764 = vmatprep.subr.bf16.mxu0 %v266
    %765 = vmatpush1.bf16.msra.mxu0 %v265
    %766 = vmatprep.subr.bf16.mxu0 %v264
    %767 = vmatpush1.bf16.msra.mxu0 %v263
    %768 = vmatprep.subr.bf16.mxu0 0
    %769 = vmatpush2.bf16.msra.mxu0 0
    %770 = vmatprep.subr.bf16.mxu0 0
    %771 = vmatpush2.bf16.msra.mxu0 0
    %772 = vmatprep.subr.bf16.mxu0 0
    %773 = vmatpush2.bf16.msra.mxu0 0
    %774 = vmatprep.subr.bf16.mxu0 0
    %775 = vmatpush2.bf16.msra.mxu0 0
    %776 = vmatprep.subr.bf16.mxu0 0
    %777 = vmatpush2.bf16.msra.mxu0 0
    %778 = vmatprep.subr.bf16.mxu0 0
    %779 = vmatpush2.bf16.msra.mxu0 0
    %780 = vmatprep.subr.bf16.mxu0 0
    %781 = vmatpush2.bf16.msra.mxu0 0
    %782 = vmatprep.subr.bf16.mxu0 0
    %783 = vmatpush2.bf16.msra.mxu0 0
    %784 = vmatprep.mubr.bf16.mxu0 0
    %785 = vmatmul.mubr.bf16.gmra.mxu0 %v750
    %v786 = vpop.f32.mrf.mxu0
    %v787 = vadd.f32 0.0, %v786
    %v788 = vpop.f32.mrf.mxu0
    %v789 = vadd.f32 0.0, %v788
    %v790 = vpop.f32.mrf.mxu0
    %v791 = vpop.f32.mrf.mxu0
    %792 = vdwg.mxu0
    %v795 = vrot.slane %v787, 4
    %v796 = vrot.slane %v789, 4
    %v797 = vrot.slane %v787, 5
    %v798 = vrot.slane %v789, 5
    %v803 = vadd.f32 %v227, %v795
    %v804 = vadd.f32 %v228, %v796
    %v805 = vadd.f32 %v229, %v797
    %v806 = vadd.f32 %v230, %v798
    %v807 = vxor.u32 %v803, 2147483648
    %v808 = vxor.u32 %v805, 2147483648
    %v809 = vmul.f32 %v807, 1.442695
    %v810 = vpow.pop %v809
    %v811 = vmul.f32 %v808, 1.442695
    %v812 = vpow.pop %v811
    %v813 = vadd.f32 %v810, 1.0
    %v814 = vadd.f32 %v812, 1.0
    %v815 = vrcp.pop %v813
    %v816 = vmul.f32 1.0, %v815
    %v817 = vrcp.pop %v814
    %v818 = vmul.f32 1.0, %v817
    %v819 = vtanh.pop %v804
    %v820 = vtanh.pop %v806
    %v821 = vxor.u32 %v804, 2147483648
    %v822 = vxor.u32 %v806, 2147483648
    %v823 = vmul.f32 %v821, 1.442695
    %v824 = vpow.pop %v823
    %v825 = vmul.f32 %v822, 1.442695
    %v826 = vpow.pop %v825
    %v827 = vadd.f32 %v824, 1.0
    %v828 = vadd.f32 %v826, 1.0
    %v829 = vrcp.pop %v827
    %v830 = vmul.f32 1.0, %v829
    %v831 = vrcp.pop %v828
    %v832 = vmul.f32 1.0, %v831
    %v835 = vrot.slane %v731, 7
    %v836 = vrot.slane %v732, 7
    %v839 = vmul.f32 %v816, %v835
    %v840 = vmul.f32 %v818, %v836
    %v841 = vmul.f32 %v816, %v819
    %v842 = vmul.f32 %v818, %v820
    %845 = vrot.lane.b32.xlu0 %v841, 64
    %v846 = vpop.permute.xlu0 %845
    %847 = vrot.lane.b32.xlu0 %v842, 64
    %v848 = vpop.permute.xlu0 %847
    %v851 = vadd.f32 %v839, %v846
    %v852 = vadd.f32 %v840, %v848
    %v853 = vtanh.pop %v851
    %v854 = vtanh.pop %v852
    %v855 = vmul.f32 %v830, %v853
    %v856 = vmul.f32 %v832, %v854
    %v857 = vpack.c.bf16 %v855, %v855
    %v858 = vpack.c.bf16 %v856, %v856
    %v861 = vunpack.c.l.b16 %v857
    %v862 = vunpack.c.l.b16 %v858
    %v863 = vrot.slane %v861, 4
    %v864 = vrot.slane %v862, 3
    %v865 = vsel %vm387, %v864, %v863
    %v866 = vpack.c.b16 %v865, %v865
    %867 = vrot.lane.b32.xlu0 %v866, 64
    %v868 = vpop.permute.xlu0 %867
    %v870 = vsel %vm279, %v868, 0
    %872 = vmatprep.subr.bf16.mxu0 0
    %873 = vmatpush1.bf16.msra.mxu0 0
    %874 = vmatprep.subr.bf16.mxu0 0
    %875 = vmatpush1.bf16.msra.mxu0 0
    %876 = vmatprep.subr.bf16.mxu0 0
    %877 = vmatpush1.bf16.msra.mxu0 0
    %878 = vmatprep.subr.bf16.mxu0 0
    %879 = vmatpush1.bf16.msra.mxu0 0
    %880 = vmatprep.subr.bf16.mxu0 %v270
    %881 = vmatpush1.bf16.msra.mxu0 %v269
    %882 = vmatprep.subr.bf16.mxu0 %v268
    %883 = vmatpush1.bf16.msra.mxu0 %v267
    %884 = vmatprep.subr.bf16.mxu0 %v266
    %885 = vmatpush1.bf16.msra.mxu0 %v265
    %886 = vmatprep.subr.bf16.mxu0 %v264
    %887 = vmatpush1.bf16.msra.mxu0 %v263
    %888 = vmatprep.subr.bf16.mxu0 0
    %889 = vmatpush2.bf16.msra.mxu0 0
    %890 = vmatprep.subr.bf16.mxu0 0
    %891 = vmatpush2.bf16.msra.mxu0 0
    %892 = vmatprep.subr.bf16.mxu0 0
    %893 = vmatpush2.bf16.msra.mxu0 0
    %894 = vmatprep.subr.bf16.mxu0 0
    %895 = vmatpush2.bf16.msra.mxu0 0
    %896 = vmatprep.subr.bf16.mxu0 0
    %897 = vmatpush2.bf16.msra.mxu0 0
    %898 = vmatprep.subr.bf16.mxu0 0
    %899 = vmatpush2.bf16.msra.mxu0 0
    %900 = vmatprep.subr.bf16.mxu0 0
    %901 = vmatpush2.bf16.msra.mxu0 0
    %902 = vmatprep.subr.bf16.mxu0 0
    %903 = vmatpush2.bf16.msra.mxu0 0
    %904 = vmatprep.mubr.bf16.mxu0 0
    %905 = vmatmul.mubr.bf16.gmra.mxu0 %v870
    %v906 = vpop.f32.mrf.mxu0
    %v907 = vadd.f32 0.0, %v906
    %v908 = vpop.f32.mrf.mxu0
    %v909 = vadd.f32 0.0, %v908
    %v910 = vpop.f32.mrf.mxu0
    %v911 = vpop.f32.mrf.mxu0
    %912 = vdwg.mxu0
    %v915 = vrot.slane %v907, 3
    %v916 = vrot.slane %v909, 3
    %v917 = vrot.slane %v907, 4
    %v918 = vrot.slane %v909, 4
    %v923 = vadd.f32 %v227, %v915
    %v924 = vadd.f32 %v228, %v916
    %v925 = vadd.f32 %v229, %v917
    %v926 = vadd.f32 %v230, %v918
    %v927 = vxor.u32 %v923, 2147483648
    %v928 = vxor.u32 %v925, 2147483648
    %v929 = vmul.f32 %v927, 1.442695
    %v930 = vpow.pop %v929
    %v931 = vmul.f32 %v928, 1.442695
    %v932 = vpow.pop %v931
    %v933 = vadd.f32 %v930, 1.0
    %v934 = vadd.f32 %v932, 1.0
    %v935 = vrcp.pop %v933
    %v936 = vmul.f32 1.0, %v935
    %v937 = vrcp.pop %v934
    %v938 = vmul.f32 1.0, %v937
    %v939 = vtanh.pop %v924
    %v940 = vtanh.pop %v926
    %v941 = vxor.u32 %v924, 2147483648
    %v942 = vxor.u32 %v926, 2147483648
    %v943 = vmul.f32 %v941, 1.442695
    %v944 = vpow.pop %v943
    %v945 = vmul.f32 %v942, 1.442695
    %v946 = vpow.pop %v945
    %v947 = vadd.f32 %v944, 1.0
    %v948 = vadd.f32 %v946, 1.0
    %v949 = vrcp.pop %v947
    %v950 = vmul.f32 1.0, %v949
    %v951 = vrcp.pop %v948
    %v952 = vmul.f32 1.0, %v951
    %v955 = vrot.slane %v851, 7
    %v956 = vrot.slane %v852, 7
    %v959 = vmul.f32 %v936, %v955
    %v960 = vmul.f32 %v938, %v956
    %v961 = vmul.f32 %v936, %v939
    %v962 = vmul.f32 %v938, %v940
    %965 = vrot.lane.b32.xlu0 %v961, 64
    %v966 = vpop.permute.xlu0 %965
    %967 = vrot.lane.b32.xlu0 %v962, 64
    %v968 = vpop.permute.xlu0 %967
    %v971 = vadd.f32 %v959, %v966
    %v972 = vadd.f32 %v960, %v968
    %v973 = vtanh.pop %v971
    %v974 = vtanh.pop %v972
    %v975 = vmul.f32 %v950, %v973
    %v976 = vmul.f32 %v952, %v974
    %v977 = vpack.c.bf16 %v975, %v975
    %v978 = vpack.c.bf16 %v976, %v976
    %v981 = vunpack.c.l.b16 %v977
    %v982 = vunpack.c.l.b16 %v978
    %v983 = vrot.slane %v981, 5
    %v984 = vrot.slane %v982, 4
    %v985 = vsel %vm387, %v984, %v983
    %v986 = vpack.c.b16 %v985, %v985
    %987 = vrot.lane.b32.xlu0 %v986, 64
    %v988 = vpop.permute.xlu0 %987
    %v990 = vsel %vm279, %v988, 0
    %992 = vmatprep.subr.bf16.mxu0 0
    %993 = vmatpush1.bf16.msra.mxu0 0
    %994 = vmatprep.subr.bf16.mxu0 0
    %995 = vmatpush1.bf16.msra.mxu0 0
    %996 = vmatprep.subr.bf16.mxu0 0
    %997 = vmatpush1.bf16.msra.mxu0 0
    %998 = vmatprep.subr.bf16.mxu0 0
    %999 = vmatpush1.bf16.msra.mxu0 0
    %1000 = vmatprep.subr.bf16.mxu0 %v270
    %1001 = vmatpush1.bf16.msra.mxu0 %v269
    %1002 = vmatprep.subr.bf16.mxu0 %v268
    %1003 = vmatpush1.bf16.msra.mxu0 %v267
    %1004 = vmatprep.subr.bf16.mxu0 %v266
    %1005 = vmatpush1.bf16.msra.mxu0 %v265
    %1006 = vmatprep.subr.bf16.mxu0 %v264
    %1007 = vmatpush1.bf16.msra.mxu0 %v263
    %1008 = vmatprep.subr.bf16.mxu0 0
    %1009 = vmatpush2.bf16.msra.mxu0 0
    %1010 = vmatprep.subr.bf16.mxu0 0
    %1011 = vmatpush2.bf16.msra.mxu0 0
    %1012 = vmatprep.subr.bf16.mxu0 0
    %1013 = vmatpush2.bf16.msra.mxu0 0
    %1014 = vmatprep.subr.bf16.mxu0 0
    %1015 = vmatpush2.bf16.msra.mxu0 0
    %1016 = vmatprep.subr.bf16.mxu0 0
    %1017 = vmatpush2.bf16.msra.mxu0 0
    %1018 = vmatprep.subr.bf16.mxu0 0
    %1019 = vmatpush2.bf16.msra.mxu0 0
    %1020 = vmatprep.subr.bf16.mxu0 0
    %1021 = vmatpush2.bf16.msra.mxu0 0
    %1022 = vmatprep.subr.bf16.mxu0 0
    %1023 = vmatpush2.bf16.msra.mxu0 0
    %1024 = vmatprep.mubr.bf16.mxu0 0
    %1025 = vmatmul.mubr.bf16.gmra.mxu0 %v990
    %v1026 = vpop.f32.mrf.mxu0
    %v1027 = vadd.f32 0.0, %v1026
    %v1028 = vpop.f32.mrf.mxu0
    %v1029 = vadd.f32 0.0, %v1028
    %v1030 = vpop.f32.mrf.mxu0
    %v1031 = vpop.f32.mrf.mxu0
    %1032 = vdwg.mxu0
    %v1035 = vrot.slane %v1027, 2
    %v1036 = vrot.slane %v1029, 2
    %v1037 = vrot.slane %v1027, 3
    %v1038 = vrot.slane %v1029, 3
    %v1043 = vadd.f32 %v227, %v1035
    %v1044 = vadd.f32 %v228, %v1036
    %v1045 = vadd.f32 %v229, %v1037
    %v1046 = vadd.f32 %v230, %v1038
    %v1047 = vxor.u32 %v1043, 2147483648
    %v1048 = vxor.u32 %v1045, 2147483648
    %v1049 = vmul.f32 %v1047, 1.442695
    %v1050 = vpow.pop %v1049
    %v1051 = vmul.f32 %v1048, 1.442695
    %v1052 = vpow.pop %v1051
    %v1053 = vadd.f32 %v1050, 1.0
    %v1054 = vadd.f32 %v1052, 1.0
    %v1055 = vrcp.pop %v1053
    %v1056 = vmul.f32 1.0, %v1055
    %v1057 = vrcp.pop %v1054
    %v1058 = vmul.f32 1.0, %v1057
    %v1059 = vtanh.pop %v1044
    %v1060 = vtanh.pop %v1046
    %v1061 = vxor.u32 %v1044, 2147483648
    %v1062 = vxor.u32 %v1046, 2147483648
    %v1063 = vmul.f32 %v1061, 1.442695
    %v1064 = vpow.pop %v1063
    %v1065 = vmul.f32 %v1062, 1.442695
    %v1066 = vpow.pop %v1065
    %v1067 = vadd.f32 %v1064, 1.0
    %v1068 = vadd.f32 %v1066, 1.0
    %v1069 = vrcp.pop %v1067
    %v1070 = vmul.f32 1.0, %v1069
    %v1071 = vrcp.pop %v1068
    %v1072 = vmul.f32 1.0, %v1071
    %v1075 = vrot.slane %v971, 7
    %v1076 = vrot.slane %v972, 7
    %v1079 = vmul.f32 %v1056, %v1075
    %v1080 = vmul.f32 %v1058, %v1076
    %v1081 = vmul.f32 %v1056, %v1059
    %v1082 = vmul.f32 %v1058, %v1060
    %1085 = vrot.lane.b32.xlu0 %v1081, 64
    %v1086 = vpop.permute.xlu0 %1085
    %1087 = vrot.lane.b32.xlu0 %v1082, 64
    %v1088 = vpop.permute.xlu0 %1087
    %v1091 = vadd.f32 %v1079, %v1086
    %v1092 = vadd.f32 %v1080, %v1088
    %v1093 = vtanh.pop %v1091
    %v1094 = vtanh.pop %v1092
    %v1095 = vmul.f32 %v1070, %v1093
    %v1096 = vmul.f32 %v1072, %v1094
    %v1097 = vpack.c.bf16 %v1095, %v1095
    %v1098 = vpack.c.bf16 %v1096, %v1096
    %v1101 = vunpack.c.l.b16 %v1097
    %v1102 = vunpack.c.l.b16 %v1098
    %v1103 = vrot.slane %v1101, 6
    %v1104 = vrot.slane %v1102, 5
    %v1105 = vsel %vm387, %v1104, %v1103
    %v1106 = vpack.c.b16 %v1105, %v1105
    %1107 = vrot.lane.b32.xlu0 %v1106, 64
    %v1108 = vpop.permute.xlu0 %1107
    %v1110 = vsel %vm279, %v1108, 0
    %1112 = vmatprep.subr.bf16.mxu0 0
    %1113 = vmatpush1.bf16.msra.mxu0 0
    %1114 = vmatprep.subr.bf16.mxu0 0
    %1115 = vmatpush1.bf16.msra.mxu0 0
    %1116 = vmatprep.subr.bf16.mxu0 0
    %1117 = vmatpush1.bf16.msra.mxu0 0
    %1118 = vmatprep.subr.bf16.mxu0 0
    %1119 = vmatpush1.bf16.msra.mxu0 0
    %1120 = vmatprep.subr.bf16.mxu0 %v270
    %1121 = vmatpush1.bf16.msra.mxu0 %v269
    %1122 = vmatprep.subr.bf16.mxu0 %v268
    %1123 = vmatpush1.bf16.msra.mxu0 %v267
    %1124 = vmatprep.subr.bf16.mxu0 %v266
    %1125 = vmatpush1.bf16.msra.mxu0 %v265
    %1126 = vmatprep.subr.bf16.mxu0 %v264
    %1127 = vmatpush1.bf16.msra.mxu0 %v263
    %1128 = vmatprep.subr.bf16.mxu0 0
    %1129 = vmatpush2.bf16.msra.mxu0 0
    %1130 = vmatprep.subr.bf16.mxu0 0
    %1131 = vmatpush2.bf16.msra.mxu0 0
    %1132 = vmatprep.subr.bf16.mxu0 0
    %1133 = vmatpush2.bf16.msra.mxu0 0
    %1134 = vmatprep.subr.bf16.mxu0 0
    %1135 = vmatpush2.bf16.msra.mxu0 0
    %1136 = vmatprep.subr.bf16.mxu0 0
    %1137 = vmatpush2.bf16.msra.mxu0 0
    %1138 = vmatprep.subr.bf16.mxu0 0
    %1139 = vmatpush2.bf16.msra.mxu0 0
    %1140 = vmatprep.subr.bf16.mxu0 0
    %1141 = vmatpush2.bf16.msra.mxu0 0
    %1142 = vmatprep.subr.bf16.mxu0 0
    %1143 = vmatpush2.bf16.msra.mxu0 0
    %1144 = vmatprep.mubr.bf16.mxu0 0
    %1145 = vmatmul.mubr.bf16.gmra.mxu0 %v1110
    %v1146 = vpop.f32.mrf.mxu0
    %v1147 = vadd.f32 0.0, %v1146
    %v1148 = vpop.f32.mrf.mxu0
    %v1149 = vadd.f32 0.0, %v1148
    %v1150 = vpop.f32.mrf.mxu0
    %v1151 = vpop.f32.mrf.mxu0
    %1152 = vdwg.mxu0
    %v1155 = vrot.slane %v1147, 1
    %v1156 = vrot.slane %v1149, 1
    %v1157 = vrot.slane %v1147, 2
    %v1158 = vrot.slane %v1149, 2
    %v1163 = vadd.f32 %v227, %v1155
    %v1164 = vadd.f32 %v228, %v1156
    %v1165 = vadd.f32 %v229, %v1157
    %v1166 = vadd.f32 %v230, %v1158
    %v1167 = vxor.u32 %v1163, 2147483648
    %v1168 = vxor.u32 %v1165, 2147483648
    %v1169 = vmul.f32 %v1167, 1.442695
    %v1170 = vpow.pop %v1169
    %v1171 = vmul.f32 %v1168, 1.442695
    %v1172 = vpow.pop %v1171
    %v1173 = vadd.f32 %v1170, 1.0
    %v1174 = vadd.f32 %v1172, 1.0
    %v1175 = vrcp.pop %v1173
    %v1176 = vmul.f32 1.0, %v1175
    %v1177 = vrcp.pop %v1174
    %v1178 = vmul.f32 1.0, %v1177
    %v1179 = vtanh.pop %v1164
    %v1180 = vtanh.pop %v1166
    %v1181 = vxor.u32 %v1164, 2147483648
    %v1182 = vxor.u32 %v1166, 2147483648
    %v1183 = vmul.f32 %v1181, 1.442695
    %v1184 = vpow.pop %v1183
    %v1185 = vmul.f32 %v1182, 1.442695
    %v1186 = vpow.pop %v1185
    %v1187 = vadd.f32 %v1184, 1.0
    %v1188 = vadd.f32 %v1186, 1.0
    %v1189 = vrcp.pop %v1187
    %v1190 = vmul.f32 1.0, %v1189
    %v1191 = vrcp.pop %v1188
    %v1192 = vmul.f32 1.0, %v1191
    %v1195 = vrot.slane %v1091, 7
    %v1196 = vrot.slane %v1092, 7
    %v1199 = vmul.f32 %v1176, %v1195
    %v1200 = vmul.f32 %v1178, %v1196
    %v1201 = vmul.f32 %v1176, %v1179
    %v1202 = vmul.f32 %v1178, %v1180
    %1205 = vrot.lane.b32.xlu0 %v1201, 64
    %v1206 = vpop.permute.xlu0 %1205
    %1207 = vrot.lane.b32.xlu0 %v1202, 64
    %v1208 = vpop.permute.xlu0 %1207
    %v1211 = vadd.f32 %v1199, %v1206
    %v1212 = vadd.f32 %v1200, %v1208
    %v1213 = vtanh.pop %v1211
    %v1214 = vtanh.pop %v1212
    %v1215 = vmul.f32 %v1190, %v1213
    %v1216 = vmul.f32 %v1192, %v1214
    %v1217 = vsel %vm163, %v378, %v496
    %v1218 = vsel %vm163, %v379, %v497
    %v1219 = vsel %vm168, %v1217, %v615
    %v1220 = vsel %vm168, %v1218, %v616
    %v1221 = vsel %vm173, %v1219, %v735
    %v1222 = vsel %vm173, %v1220, %v736
    %v1223 = vsel %vm178, %v1221, %v855
    %v1224 = vsel %vm178, %v1222, %v856
    %v1225 = vsel %vm183, %v1223, %v975
    %v1226 = vsel %vm183, %v1224, %v976
    %v1227 = vsel %vm188, %v1225, %v1095
    %v1228 = vsel %vm188, %v1226, %v1096
    %v1229 = vsel %vm193, %v1227, %v1215
    %v1230 = vsel %vm193, %v1228, %v1216
    %v1233 = vrot.slane %v1215, 7
    %v1234 = vrot.slane %v1216, 7
    %v1239 = vrot.slane %v1095, 5
    %v1240 = vrot.slane %v1096, 5
    %v1245 = vrot.slane %v975, 3
    %v1246 = vrot.slane %v976, 3
    %v1251 = vrot.slane %v855, 1
    %v1252 = vrot.slane %v856, 1
    %v1257 = vrot.slane %v735, 7
    %v1258 = vrot.slane %v736, 7
    %v1263 = vrot.slane %v615, 5
    %v1264 = vrot.slane %v616, 5
    %v1269 = vrot.slane %v496, 3
    %v1270 = vrot.slane %v497, 3
    %v1275 = vrot.slane %v378, 1
    %v1276 = vrot.slane %v379, 1
    %v1279 = vsel %vm163, %v1233, %v1239
    %v1280 = vsel %vm163, %v1234, %v1240
    %v1281 = vsel %vm168, %v1279, %v1245
    %v1282 = vsel %vm168, %v1280, %v1246
    %v1283 = vsel %vm173, %v1281, %v1251
    %v1284 = vsel %vm173, %v1282, %v1252
    %v1285 = vsel %vm178, %v1283, %v1257
    %v1286 = vsel %vm178, %v1284, %v1258
    %v1287 = vsel %vm183, %v1285, %v1263
    %v1288 = vsel %vm183, %v1286, %v1264
    %v1289 = vsel %vm188, %v1287, %v1269
    %v1290 = vsel %vm188, %v1288, %v1270
    %v1291 = vsel %vm193, %v1289, %v1275
    %v1292 = vsel %vm193, %v1290, %v1276
    %1295 = vrot.lane.b32.xlu0 %v1291, 96
    %v1296 = vpop.permute.xlu0 %1295
    %1297 = vrot.lane.b32.xlu0 %v1292, 96
    %v1298 = vpop.permute.xlu0 %1297
    %v1301 = vadd.f32 %v1229, %v1296
    %v1302 = vadd.f32 %v1230, %v1298
    %v1303 = vld [vmem:[%s4] sm:$0xff]
    %v1304 = vld [vmem:[%s4 + $0x8] sm:$0xff]
    %v1305 = vld [vmem:[%s4 + $0x10] sm:$0xff]
    %v1306 = vld [vmem:[%s4 + $0x18] sm:$0xff]
    %v1307 = vld [vmem:[%s5] sm:$0x1]
    %v1309 = vlaneseq
    %v1310 = vshrl.u32 %v1309, 7
    %v1311 = vsub.s32 0, %v1310
    %v1312 = vrot.slane %v1307, %v1311
    %1316 = vrot.lane.b32.xlu0 %v1301, 64
    %v1317 = vpop.permute.xlu0 %1316
    %1318 = vrot.lane.b32.xlu0 %v1302, 64
    %v1319 = vpop.permute.xlu0 %1318
    %v1320 = vsel %vm80, %v1317, 0
    %v1322 = vsel %vm80, %v1319, 0
    %1324 = vmatprep.subr.mxu0 0.0
    %1325 = vmatpush1.msra.mxu0 0.0
    %1326 = vmatprep.subr.mxu0 0.0
    %1327 = vmatpush1.msra.mxu0 0.0
    %1328 = vmatprep.subr.mxu0 0.0
    %1329 = vmatpush1.msra.mxu0 0.0
    %1330 = vmatprep.subr.mxu0 0.0
    %1331 = vmatpush1.msra.mxu0 0.0
    %1332 = vmatprep.subr.mxu0 0.0
    %1333 = vmatpush1.msra.mxu0 0.0
    %1334 = vmatprep.subr.mxu0 0.0
    %1335 = vmatpush1.msra.mxu0 0.0
    %1336 = vmatprep.subr.mxu0 0.0
    %1337 = vmatpush1.msra.mxu0 0.0
    %1338 = vmatprep.subr.mxu0 0.0
    %1339 = vmatpush1.msra.mxu0 0.0
    %1340 = vmatprep.subr.mxu0 0.0
    %1341 = vmatpush1.msra.mxu0 0.0
    %1342 = vmatprep.subr.mxu0 0.0
    %1343 = vmatpush1.msra.mxu0 0.0
    %1344 = vmatprep.subr.mxu0 0.0
    %1345 = vmatpush1.msra.mxu0 0.0
    %1346 = vmatprep.subr.mxu0 0.0
    %1347 = vmatpush1.msra.mxu0 0.0
    %1348 = vmatprep.subr.mxu0 0.0
    %1349 = vmatpush1.msra.mxu0 %v1306
    %1350 = vmatprep.subr.mxu0 0.0
    %1351 = vmatpush1.msra.mxu0 %v1305
    %1352 = vmatprep.subr.mxu0 0.0
    %1353 = vmatpush1.msra.mxu0 %v1304
    %1354 = vmatprep.subr.mxu0 0.0
    %1355 = vmatpush1.msra.mxu0 %v1303
    %1356 = vmatprep.subr.mxu0 0.0
    %1357 = vmatpush2.msra.mxu0 0.0
    %1358 = vmatprep.subr.mxu0 0.0
    %1359 = vmatpush2.msra.mxu0 0.0
    %1360 = vmatprep.subr.mxu0 0.0
    %1361 = vmatpush2.msra.mxu0 0.0
    %1362 = vmatprep.subr.mxu0 0.0
    %1363 = vmatpush2.msra.mxu0 0.0
    %1364 = vmatprep.subr.mxu0 0.0
    %1365 = vmatpush2.msra.mxu0 0.0
    %1366 = vmatprep.subr.mxu0 0.0
    %1367 = vmatpush2.msra.mxu0 0.0
    %1368 = vmatprep.subr.mxu0 0.0
    %1369 = vmatpush2.msra.mxu0 0.0
    %1370 = vmatprep.subr.mxu0 0.0
    %1371 = vmatpush2.msra.mxu0 0.0
    %1372 = vmatprep.subr.mxu0 0.0
    %1373 = vmatpush2.msra.mxu0 0.0
    %1374 = vmatprep.subr.mxu0 0.0
    %1375 = vmatpush2.msra.mxu0 0.0
    %1376 = vmatprep.subr.mxu0 0.0
    %1377 = vmatpush2.msra.mxu0 0.0
    %1378 = vmatprep.subr.mxu0 0.0
    %1379 = vmatpush2.msra.mxu0 0.0
    %1380 = vmatprep.subr.mxu0 0.0
    %1381 = vmatpush2.msra.mxu0 0.0
    %1382 = vmatprep.subr.mxu0 0.0
    %1383 = vmatpush2.msra.mxu0 0.0
    %1384 = vmatprep.subr.mxu0 0.0
    %1385 = vmatpush2.msra.mxu0 0.0
    %1386 = vmatprep.subr.mxu0 0.0
    %1387 = vmatpush2.msra.mxu0 0.0
    %1388 = vmatprep.mubr.f32.mxu0 0.0
    %1389 = vmatmul.mubr.f32.gmra.mxu0 %v1320
    %v1390 = vpop.f32.mrf.mxu0
    %v1391 = vadd.f32 %v1312, %v1390
    %v1392 = vpop.f32.mrf.mxu0
    %1393 = vmatprep.mubr.f32.mxu0 0.0
    %1394 = vmatmul.mubr.f32.gmra.mxu0 %v1322
    %v1395 = vpop.f32.mrf.mxu0
    %v1396 = vadd.f32 %v1312, %v1395
    %v1397 = vpop.f32.mrf.mxu0
    %1398 = vdwg.mxu0
    %v1399 = vtanh.pop %v1391
    %v1400 = vtanh.pop %v1396
    %v1401 = vld [vmem:[%s6] sm:$0x1]
    %v1403 = vlaneseq
    %v1404 = vshrl.u32 %v1403, 7
    %v1405 = vsub.s32 0, %v1404
    %v1406 = vrot.slane %v1401, %v1405
    %v1408 = vmul.f32 %v1399, %v1406
    %v1409 = vmul.f32 %v1400, %v1406
    %vm1410 = vcmask 130048
    %v1411 = vsel %vm1410, %v1408, 0.0
    %1412 = vadd.xlane.f32.xlu0 %v1411
    %v1413 = vpop.xlane.xlu0 %1412
    %v1414 = vsel %vm1410, %v1409, 0.0
    %1415 = vadd.xlane.f32.xlu0 %v1414
    %v1416 = vpop.xlane.xlu0 %1415
    %v1419 = vlaneseq
    %v1420 = vshrl.u32 %v1419, 7
    %v1421 = vsub.s32 %v199, %v1420
    %v1422 = vrot.slane %v1413, %v1421
    %v1423 = vlaneseq
    %v1424 = vshrl.u32 %v1423, 7
    %v1425 = vsub.s32 %v199, %v1424
    %v1426 = vrot.slane %v1416, %v1425
    %v1427 = vsel %vm387, %v1426, %v1422
    %vm1429 = vcmask 58368
    %v1430 = vsel %vm1429, %v1427, -inf
    %1431 = vmax.xlane.f32.xlu0 %v1430
    %v1432 = vpop.xlane.xlu0 %1431
    %v1434 = vlaneseq
    %v1435 = vshrl.u32 %v1434, 7
    %v1436 = vsub.s32 0, %v1435
    %v1437 = vrot.slane %v1432, %v1436
    %v1438 = vlaneseq
    %v1439 = vshrl.u32 %v1438, 7
    %v1440 = vsub.s32 1, %v1439
    %v1441 = vrot.slane %v1432, %v1440
    %v1444 = vsub.f32 %v1413, %v1437
    %v1445 = vsub.f32 %v1416, %v1441
    %v1446 = vmul.f32 %v1444, 1.442695
    %v1447 = vpow.pop %v1446
    %v1448 = vmul.f32 %v1445, 1.442695
    %v1449 = vpow.pop %v1448
    %1452 = vset.pattern.permute.xlu0 0
    %1453 = vperm.xlu0 %1452, %v1447
    %v1454 = vpop.permute.xlu0 %1453
    %1455 = vset.pattern.permute.xlu0 0
    %1456 = vperm.xlu0 %1455, %v1449
    %v1457 = vpop.permute.xlu0 %1456
    %v1458 = vlaneseq
    %v1459 = vshrl.u32 %v1458, 7
    %v1460 = vsub.s32 %v199, %v1459
    %v1461 = vrot.slane %v1454, %v1460
    %v1462 = vlaneseq
    %v1463 = vshrl.u32 %v1462, 7
    %v1464 = vsub.s32 %v199, %v1463
    %v1465 = vrot.slane %v1457, %v1464
    %v1466 = vsel %vm387, %v1465, %v1461
    %v1468 = vsel %vm1429, %v1466, 0.0
    %1469 = vadd.xlane.f32.xlu0 %v1468
    %v1470 = vpop.xlane.xlu0 %1469
    %v1472 = vlaneseq
    %v1473 = vshrl.u32 %v1472, 7
    %v1474 = vsub.s32 0, %v1473
    %v1475 = vrot.slane %v1470, %v1474
    %v1476 = vlaneseq
    %v1477 = vshrl.u32 %v1476, 7
    %v1478 = vsub.s32 1, %v1477
    %v1479 = vrot.slane %v1470, %v1478
    %v1482 = vrcp.pop %v1475
    %v1483 = vmul.f32 %v1447, %v1482
    %v1484 = vrcp.pop %v1479
    %v1485 = vmul.f32 %v1449, %v1484
    %1488 = vset.pattern.permute.xlu0 0
    %1489 = vperm.xlu0 %1488, %v1483
    %v1490 = vpop.permute.xlu0 %1489
    %1491 = vset.pattern.permute.xlu0 0
    %1492 = vperm.xlu0 %1491, %v1485
    %v1493 = vpop.permute.xlu0 %1492
    %v1494 = vlaneseq
    %v1495 = vshrl.u32 %v1494, 7
    %v1496 = vsub.s32 %v199, %v1495
    %v1497 = vrot.slane %v1490, %v1496
    %v1498 = vlaneseq
    %v1499 = vshrl.u32 %v1498, 7
    %v1500 = vsub.s32 %v199, %v1499
    %v1501 = vrot.slane %v1493, %v1500
    %v1502 = vsel %vm387, %v1501, %v1497
    %1504 = vst.msk [vmem:[#allocation4] sm:$0x3] %vm1429, %v1502
    %v1507 = vmul.f32 %v1490, %v1301
    %v1508 = vmul.f32 %v1493, %v1302
    %vm1509 = vcmask 785920
    %v1510 = vsel %vm1509, %v1507, 0.0
    %v1511 = vrot.slane %v1510, 4
    %v1512 = vadd.f32 %v1510, %v1511
    %v1513 = vrot.slane %v1512, 2
    %v1514 = vadd.f32 %v1512, %v1513
    %v1515 = vrot.slane %v1514, 1
    %v1516 = vadd.f32 %v1514, %v1515
    %v1517 = vsel %vm1509, %v1508, 0.0
    %v1518 = vrot.slane %v1517, 4
    %v1519 = vadd.f32 %v1517, %v1518
    %v1520 = vrot.slane %v1519, 2
    %v1521 = vadd.f32 %v1519, %v1520
    %v1522 = vrot.slane %v1521, 1
    %v1523 = vadd.f32 %v1521, %v1522
    %v1524 = vtanh.pop %v1516
    %v1525 = vtanh.pop %v1523
    %v1526 = vld [vmem:[%s7] sm:$0xff]
    %v1527 = vld [vmem:[%s7 + $0x8] sm:$0xff]
    %v1528 = vld [vmem:[%s7 + $0x10] sm:$0xff]
    %v1529 = vld [vmem:[%s7 + $0x18] sm:$0xff]
    %v1530 = vld [vmem:[%s8] sm:$0x1]
    %v1532 = vlaneseq
    %v1533 = vshrl.u32 %v1532, 7
    %v1534 = vsub.s32 0, %v1533
    %v1535 = vrot.slane %v1530, %v1534
    %v1539 = vsel %vm387, %v1525, %v1524
    %1540 = vrot.lane.b32.xlu0 %v1539, 64
    %v1541 = vpop.permute.xlu0 %1540
    %v1542 = vsel %vm80, %v1541, 0
    %1544 = vmatprep.subr.mxu0 0.0
    %1545 = vmatpush1.msra.mxu0 0.0
    %1546 = vmatprep.subr.mxu0 0.0
    %1547 = vmatpush1.msra.mxu0 0.0
    %1548 = vmatprep.subr.mxu0 0.0
    %1549 = vmatpush1.msra.mxu0 0.0
    %1550 = vmatprep.subr.mxu0 0.0
    %1551 = vmatpush1.msra.mxu0 0.0
    %1552 = vmatprep.subr.mxu0 0.0
    %1553 = vmatpush1.msra.mxu0 0.0
    %1554 = vmatprep.subr.mxu0 0.0
    %1555 = vmatpush1.msra.mxu0 0.0
    %1556 = vmatprep.subr.mxu0 0.0
    %1557 = vmatpush1.msra.mxu0 0.0
    %1558 = vmatprep.subr.mxu0 0.0
    %1559 = vmatpush1.msra.mxu0 0.0
    %1560 = vmatprep.subr.mxu0 0.0
    %1561 = vmatpush1.msra.mxu0 0.0
    %1562 = vmatprep.subr.mxu0 0.0
    %1563 = vmatpush1.msra.mxu0 0.0
    %1564 = vmatprep.subr.mxu0 0.0
    %1565 = vmatpush1.msra.mxu0 0.0
    %1566 = vmatprep.subr.mxu0 0.0
    %1567 = vmatpush1.msra.mxu0 0.0
    %1568 = vmatprep.subr.mxu0 0.0
    %1569 = vmatpush1.msra.mxu0 %v1529
    %1570 = vmatprep.subr.mxu0 0.0
    %1571 = vmatpush1.msra.mxu0 %v1528
    %1572 = vmatprep.subr.mxu0 0.0
    %1573 = vmatpush1.msra.mxu0 %v1527
    %1574 = vmatprep.subr.mxu0 0.0
    %1575 = vmatpush1.msra.mxu0 %v1526
    %1576 = vmatprep.subr.mxu0 0.0
    %1577 = vmatpush2.msra.mxu0 0.0
    %1578 = vmatprep.subr.mxu0 0.0
    %1579 = vmatpush2.msra.mxu0 0.0
    %1580 = vmatprep.subr.mxu0 0.0
    %1581 = vmatpush2.msra.mxu0 0.0
    %1582 = vmatprep.subr.mxu0 0.0
    %1583 = vmatpush2.msra.mxu0 0.0
    %1584 = vmatprep.subr.mxu0 0.0
    %1585 = vmatpush2.msra.mxu0 0.0
    %1586 = vmatprep.subr.mxu0 0.0
    %1587 = vmatpush2.msra.mxu0 0.0
    %1588 = vmatprep.subr.mxu0 0.0
    %1589 = vmatpush2.msra.mxu0 0.0
    %1590 = vmatprep.subr.mxu0 0.0
    %1591 = vmatpush2.msra.mxu0 0.0
    %1592 = vmatprep.subr.mxu0 0.0
    %1593 = vmatpush2.msra.mxu0 0.0
    %1594 = vmatprep.subr.mxu0 0.0
    %1595 = vmatpush2.msra.mxu0 0.0
    %1596 = vmatprep.subr.mxu0 0.0
    %1597 = vmatpush2.msra.mxu0 0.0
    %1598 = vmatprep.subr.mxu0 0.0
    %1599 = vmatpush2.msra.mxu0 0.0
    %1600 = vmatprep.subr.mxu0 0.0
    %1601 = vmatpush2.msra.mxu0 0.0
    %1602 = vmatprep.subr.mxu0 0.0
    %1603 = vmatpush2.msra.mxu0 0.0
    %1604 = vmatprep.subr.mxu0 0.0
    %1605 = vmatpush2.msra.mxu0 0.0
    %1606 = vmatprep.subr.mxu0 0.0
    %1607 = vmatpush2.msra.mxu0 0.0
    %1608 = vmatprep.mubr.f32.mxu0 0.0
    %1609 = vmatmul.mubr.f32.gmra.mxu0 %v1542
    %v1610 = vpop.f32.mrf.mxu0
    %v1611 = vadd.f32 %v1535, %v1610
    %v1612 = vpop.f32.mrf.mxu0
    %1613 = vdwg.mxu0
    %vm1614 = vcmask 33792
    %1615 = vst.msk [vmem:[#allocation2] sm:$0x3] %vm1614, %v1611
    // Predicated region
    $region38: #{sentiment_forward.1} parent=1 // pred_check
      _
    $region39: #{sentiment_forward.1} parent=1 // pred_check_branch
      %1617 = sbr.rel (0) target = $region41
    $region40: #{sentiment_forward.1} parent=1 // pred_region
      %s1619 = ssub.s32 32, 32
      %1620 = vsyncadd [#allocation3], %s1619
      %s1622 = sshll.u32 [#allocation2], 4
      %s1623 = int_to_ptr.vmem [resolvable:$true] %s1622
      %1625 = dma.vmem_to_hbm [thread:$0]  %s1623, 32, %s9, [#allocation3]
    $region41: #{sentiment_forward.1} parent=1 // pred_fallthru
      _
    // Predicated region
    $region42: #{sentiment_forward.1} parent=1 // pred_check
      _
    $region43: #{sentiment_forward.1} parent=1 // pred_check_branch
      %1627 = sbr.rel (0) target = $region45
    $region44: #{sentiment_forward.1} parent=1 // pred_region
      %s1629 = ssub.s32 32, 32
      %1630 = vsyncadd [#allocation5], %s1629
      %s1632 = sshll.u32 [#allocation4], 4
      %s1633 = int_to_ptr.vmem [resolvable:$true] %s1632
      %1635 = dma.vmem_to_hbm [thread:$0]  %s1633, 32, %s10, [#allocation5]
    $region45: #{sentiment_forward.1} parent=1 // pred_fallthru
      _
    // Predicated region
    $region46: #{sentiment_forward.1} parent=1 // pred_check
      _
    $region47: #{sentiment_forward.1} parent=1 // pred_check_branch
      %1637 = sbr.rel (0) target = $region49
    $region48: #{sentiment_forward.1} parent=1 // pred_region
      %1638 = dma.done [#allocation3], 32
    $region49: #{sentiment_forward.1} parent=1 // pred_fallthru
      _
    // Predicated region
    $region50: #{sentiment_forward.1} parent=1 // pred_check
      _
    $region51: #{sentiment_forward.1} parent=1 // pred_check_branch
      %1640 = sbr.rel (0) target = $region53
    $region52: #{sentiment_forward.1} parent=1 // pred_region
      %1641 = dma.done [#allocation5], 32
    $region53: #{sentiment_forward.1} parent=1 // pred_fallthru
      _
    %1642 = vsyncpa [#allocation3], 1
    %1643 = vsyncpa [#allocation5], 1

</llo_original>
